<compile_context>
chip_gen: v6e
topology: v6e:2x2x1
jax: 0.10.0
libtpu: 0.0.40
codegen_flags: <defaults>
</compile_context>

<pallas_src>
import functools
import math

import jax
import jax.numpy as jnp
from jax.experimental import pallas as pl
from jax.experimental.pallas import tpu as pltpu

_BF16 = jnp.bfloat16


# ----------------------------------------------------------------------------
# In-kernel helpers (f32 math for LN / softmax, bf16 operands for the MXU)
# ----------------------------------------------------------------------------
def _ln(x, gamma, beta, eps=1e-5):
    # PyTorch nn.LayerNorm over last dim (biased variance, eps inside sqrt)
    mu = jnp.mean(x, axis=-1, keepdims=True)
    var = jnp.mean((x - mu) ** 2, axis=-1, keepdims=True)
    return (x - mu) * jax.lax.rsqrt(var + eps) * gamma + beta


def _dot_b(a_f32, w_bf16, b_f32):
    # bf16 operands, f32 accumulation, f32 bias add
    return jnp.dot(a_f32.astype(_BF16), w_bf16,
                   preferred_element_type=jnp.float32) + b_f32


# ----------------------------------------------------------------------------
# Fused trunk kernel: Linear(dim_emb, dim_hid) + n_res x ResBlock
# ----------------------------------------------------------------------------
def _trunk_kernel(*refs, n_res):
    # refs = [x, w_in, b_in, (w1, b1, w2, b2, gamma, beta) * n_res, o]
    x_ref = refs[0]
    o_ref = refs[-1]
    h = _dot_b(x_ref[...], refs[1][...], refs[2][...])          # (TILE_M, D)
    idx = 3
    for _ in range(n_res):
        w1, b1, w2, b2, g, be = (refs[idx + j][...] for j in range(6))
        idx += 6
        f = jnp.maximum(_dot_b(h, w1, b1), 0.0)
        f = _dot_b(f, w2, b2)
        h = _ln(h + f, g, be)
    o_ref[...] = h


def _pick_row_tile(m_pad):
    for t in (512, 256, 128, 64, 32, 16, 8):
        if m_pad % t == 0 and m_pad // t >= 2:
            return t
    return m_pad


def trunk_forward(x2d, params):
    """x2d: (M, dim_emb) f32 -> (M, dim_hid) f32, fused linear + ResBlocks."""
    M, de = x2d.shape
    D = params["w_in"].shape[1]
    res = params["res"]
    n_res = len(res)

    m_pad = -(-M // 8) * 8
    if m_pad != M:
        x2d = jnp.pad(x2d, ((0, m_pad - M), (0, 0)))
    tile_m = _pick_row_tile(m_pad)
    grid = (m_pad // tile_m,)

    weights = [params["w_in"], params["b_in"]]
    for rp in res:
        weights += [rp["w1"], rp["b1"], rp["w2"], rp["b2"], rp["g"], rp["be"]]

    in_specs = [pl.BlockSpec((tile_m, de), lambda i: (i, 0))]
    in_specs += [pl.BlockSpec(w.shape, lambda i: (0, 0)) for w in weights]

    out = pl.pallas_call(
        functools.partial(_trunk_kernel, n_res=n_res),
        grid=grid,
        in_specs=in_specs,
        out_specs=pl.BlockSpec((tile_m, D), lambda i: (i, 0)),
        out_shape=jax.ShapeDtypeStruct((m_pad, D), jnp.float32),
        compiler_params=pltpu.CompilerParams(dimension_semantics=("parallel",)),
    )(x2d, *weights)
    return out[:M]


# ----------------------------------------------------------------------------
# Fused MAB kernel: QKV projections + multi-head attention + LN0/fc_o/LN1
# ----------------------------------------------------------------------------
def _mab_kernel(q_ref, k_ref, wq_ref, bq_ref, wkv_ref, bkv_ref,
                wo_ref, bo_ref, g0_ref, be0_ref, g1_ref, be1_ref,
                o_ref, *, num_heads, inv_scale):
    q = q_ref[0]                                   # (Nq, dim_Q) f32
    k = k_ref[0]                                   # (Nk, dim_K) f32
    D = wq_ref.shape[1]
    dh = D // num_heads

    qp = _dot_b(q, wq_ref[...], bq_ref[...])       # (Nq, D)  f32
    kv = _dot_b(k, wkv_ref[...], bkv_ref[...])     # (Nk, 2D) f32
    kp = kv[:, :D]
    vp = kv[:, D:]

    # per-head attention (static unroll), heads merged lane-dense in-kernel
    heads = []
    for h in range(num_heads):
        sl = slice(h * dh, (h + 1) * dh)
        qh = qp[:, sl].astype(_BF16)               # (Nq, dh)
        kh = kp[:, sl].astype(_BF16)               # (Nk, dh)
        vh = vp[:, sl].astype(_BF16)               # (Nk, dh)
        s = jax.lax.dot_general(                   # (Nq, Nk) f32
            qh, kh, (((1,), (1,)), ((), ())),
            preferred_element_type=jnp.float32) * inv_scale
        s = s - jnp.max(s, axis=-1, keepdims=True)
        p = jnp.exp(s)
        p = p * pl.reciprocal(jnp.sum(p, axis=-1, keepdims=True), approx=True)
        heads.append(jnp.dot(p.astype(_BF16), vh,
                             preferred_element_type=jnp.float32))
    attn = jnp.concatenate(heads, axis=-1)         # (Nq, D) f32, lane-dense

    h0 = _ln(qp + attn, g0_ref[...], be0_ref[...])
    f = _dot_b(h0, wo_ref[...], bo_ref[...])
    h1 = h0 + jnp.maximum(f, 0.0)
    o_ref[0] = _ln(h1, g1_ref[...], be1_ref[...])


def mab_forward(Q, K, p, mask=None):
    """Fused Multihead Attention Block.  Q: (Bq, Nq, dim_Q), K: (B, Nk, dim_K)."""
    # TODO(synk): key mask not applied (mask=None path only).
    B, Nk, dim_K = K.shape
    Bq, Nq, dim_Q = Q.shape
    D = p["wq"].shape[1]
    H = p["num_heads"]
    # NOTE: scale is sqrt(dim_V) (Set-Transformer convention), not sqrt(head_dim).
    kern = functools.partial(_mab_kernel, num_heads=H,
                             inv_scale=1.0 / math.sqrt(D))

    q_map = (lambda b: (b, 0, 0)) if Bq == B else (lambda b: (0, 0, 0))
    args = (Q, K, p["wq"], p["bq"], p["wkv"], p["bkv"],
            p["wo"], p["bo"], p["g0"], p["be0"], p["g1"], p["be1"])
    in_specs = [
        pl.BlockSpec((1, Nq, dim_Q), q_map),
        pl.BlockSpec((1, Nk, dim_K), lambda b: (b, 0, 0)),
    ] + [pl.BlockSpec(a.shape, lambda b: (0, 0)) for a in args[2:]]

    return pl.pallas_call(
        kern,
        grid=(B,),
        in_specs=in_specs,
        out_specs=pl.BlockSpec((1, Nq, D), lambda b: (b, 0, 0)),
        out_shape=jax.ShapeDtypeStruct((B, Nq, D), jnp.float32),
        compiler_params=pltpu.CompilerParams(dimension_semantics=("parallel",)),
    )(*args)


def isab_forward(X, p, mask=None):
    # Hm = MAB(I, X); out = MAB(X, Hm)
    Hm = mab_forward(p["I"], X, p["mab0"], mask=mask)
    return mab_forward(X, Hm, p["mab1"], mask=None)


# ----------------------------------------------------------------------------
# Parameter init (deterministic, PyTorch-like defaults; matmul weights in bf16)
# ----------------------------------------------------------------------------
def init_linear(key, din, dout):
    k1, k2 = jax.random.split(key)
    bound = 1.0 / math.sqrt(din)
    w = jax.random.uniform(k1, (din, dout), jnp.float32, -bound, bound)
    b = jax.random.uniform(k2, (1, dout), jnp.float32, -bound, bound)
    return w, b


def init_resblock(key, d):
    k1, k2 = jax.random.split(key)
    w1, b1 = init_linear(k1, d, d)
    w2, b2 = init_linear(k2, d, d)
    return {"w1": w1.astype(_BF16), "b1": b1,
            "w2": w2.astype(_BF16), "b2": b2,
            "g": jnp.ones((1, d), jnp.float32),
            "be": jnp.zeros((1, d), jnp.float32)}


def init_mab(key, dim_q, dim_k, dim_v, num_heads):
    ks = jax.random.split(key, 4)
    wq, bq = init_linear(ks[0], dim_q, dim_v)
    wk, bk = init_linear(ks[1], dim_k, dim_v)
    wv, bv = init_linear(ks[2], dim_k, dim_v)
    wo, bo = init_linear(ks[3], dim_v, dim_v)
    return {"wq": wq.astype(_BF16), "bq": bq,
            "wkv": jnp.concatenate([wk, wv], axis=1).astype(_BF16),
            "bkv": jnp.concatenate([bk, bv], axis=1),
            "wo": wo.astype(_BF16), "bo": bo,
            "g0": jnp.ones((1, dim_v), jnp.float32),
            "be0": jnp.zeros((1, dim_v), jnp.float32),
            "g1": jnp.ones((1, dim_v), jnp.float32),
            "be1": jnp.zeros((1, dim_v), jnp.float32),
            "num_heads": num_heads}


def init_isab(key, dim_in, dim_out, num_heads, num_inds):
    k1, k2, k3 = jax.random.split(key, 3)
    bound = math.sqrt(6.0 / (num_inds + dim_out))          # xavier_uniform
    inducing = jax.random.uniform(k1, (1, num_inds, dim_out), jnp.float32,
                                  -bound, bound)
    return {"I": inducing,
            "mab0": init_mab(k2, dim_out, dim_in, dim_out, num_heads),
            "mab1": init_mab(k3, dim_in, dim_out, dim_out, num_heads)}


def init_encoder(key, num_items, dim_emb, dim_hid, num_heads, num_inds,
                 num_enc_layers):
    ks = jax.random.split(key, 2 + num_enc_layers)
    emb = jax.random.normal(ks[0], (num_items + 1, dim_emb), jnp.float32)
    emb = emb.at[num_items].set(0.0)                        # padding_idx row
    w_in, b_in = init_linear(ks[1], dim_emb, dim_hid)
    n_res = num_enc_layers - num_enc_layers // 2            # mode='HYBRID'
    res = [init_resblock(ks[2 + i], dim_hid) for i in range(n_res)]
    isab = [init_isab(ks[2 + n_res + i], dim_hid, dim_hid, num_heads, num_inds)
            for i in range(num_enc_layers // 2)]
    return {"emb": emb, "w_in": w_in.astype(_BF16), "b_in": b_in,
            "res": res, "isab": isab}


# ----------------------------------------------------------------------------
# Encoder forward
# ----------------------------------------------------------------------------
def encoder_forward(params, x, mask=None):
    # x: (B, N) int32 item ids -> out: (B, N, dim_hidden)
    B, N = x.shape
    emb = params["emb"][x]                         # plain-JAX gather glue
    D = params["w_in"].shape[1]
    out = trunk_forward(emb.reshape(B * N, -1), params)     # fused linear + ResBlocks
    out = out.reshape(B, N, D)
    for ip in params["isab"]:
        out = isab_forward(out, ip, mask=mask)
    return out


if __name__ == "__main__":
    # small, module-consistent shapes
    B, N = 2, 8
    num_items = 50
    dim_embedding = 64
    dim_hidden = 128
    num_heads = 4
    num_inds = 10
    num_enc_layers = 4

    root = jax.random.PRNGKey(0)
    k_param, k_x = jax.random.split(root)
    params = init_encoder(k_param, num_items, dim_embedding, dim_hidden,
                          num_heads, num_inds, num_enc_layers)
    x = jax.random.randint(k_x, (B, N), 0, num_items, dtype=jnp.int32)

    out = encoder_forward(params, x, mask=None)
    out = jax.block_until_ready(out)
    assert out.shape == (B, N, dim_hidden)
    assert bool(jnp.all(jnp.isfinite(out)))
    print("KERNEL_OK")
</pallas_src>

<mosaic_0001>
module attributes {stable_mosaic.version = 11 : i64} {
  func.func @_trunk_kernel(%arg0: i32, %arg1: memref<8x64xf32, #tpu.memory_space<vmem>>, %arg2: memref<64x128xbf16, #tpu.memory_space<vmem>>, %arg3: memref<1x128xf32, #tpu.memory_space<vmem>>, %arg4: memref<128x128xbf16, #tpu.memory_space<vmem>>, %arg5: memref<1x128xf32, #tpu.memory_space<vmem>>, %arg6: memref<128x128xbf16, #tpu.memory_space<vmem>>, %arg7: memref<1x128xf32, #tpu.memory_space<vmem>>, %arg8: memref<1x128xf32, #tpu.memory_space<vmem>>, %arg9: memref<1x128xf32, #tpu.memory_space<vmem>>, %arg10: memref<128x128xbf16, #tpu.memory_space<vmem>>, %arg11: memref<1x128xf32, #tpu.memory_space<vmem>>, %arg12: memref<128x128xbf16, #tpu.memory_space<vmem>>, %arg13: memref<1x128xf32, #tpu.memory_space<vmem>>, %arg14: memref<1x128xf32, #tpu.memory_space<vmem>>, %arg15: memref<1x128xf32, #tpu.memory_space<vmem>>, %arg16: memref<8x128xf32, #tpu.memory_space<vmem>>) attributes {dimension_semantics = [#tpu.dimension_semantics<parallel>], iteration_bounds = array<i64: 2>, scalar_prefetch = 0 : i64, scratch_operands = 0 : i64, tpu.core_type = #tpu.core_type<tc>, window_params = [{transform_indices = @transform_0, window_bounds = array<i64: 8, 64>}, {pipeline_mode = #tpu.pipeline_mode<synchronous>, transform_indices = @transform_1, window_bounds = array<i64: 64, 128>}, {pipeline_mode = #tpu.pipeline_mode<synchronous>, transform_indices = @transform_2, window_bounds = array<i64: 1, 128>}, {pipeline_mode = #tpu.pipeline_mode<synchronous>, transform_indices = @transform_3, window_bounds = array<i64: 128, 128>}, {pipeline_mode = #tpu.pipeline_mode<synchronous>, transform_indices = @transform_4, window_bounds = array<i64: 1, 128>}, {pipeline_mode = #tpu.pipeline_mode<synchronous>, transform_indices = @transform_5, window_bounds = array<i64: 128, 128>}, {pipeline_mode = #tpu.pipeline_mode<synchronous>, transform_indices = @transform_6, window_bounds = array<i64: 1, 128>}, {pipeline_mode = #tpu.pipeline_mode<synchronous>, transform_indices = @transform_7, window_bounds = array<i64: 1, 128>}, {pipeline_mode = #tpu.pipeline_mode<synchronous>, transform_indices = @transform_8, window_bounds = array<i64: 1, 128>}, {pipeline_mode = #tpu.pipeline_mode<synchronous>, transform_indices = @transform_9, window_bounds = array<i64: 128, 128>}, {pipeline_mode = #tpu.pipeline_mode<synchronous>, transform_indices = @transform_10, window_bounds = array<i64: 1, 128>}, {pipeline_mode = #tpu.pipeline_mode<synchronous>, transform_indices = @transform_11, window_bounds = array<i64: 128, 128>}, {pipeline_mode = #tpu.pipeline_mode<synchronous>, transform_indices = @transform_12, window_bounds = array<i64: 1, 128>}, {pipeline_mode = #tpu.pipeline_mode<synchronous>, transform_indices = @transform_13, window_bounds = array<i64: 1, 128>}, {pipeline_mode = #tpu.pipeline_mode<synchronous>, transform_indices = @transform_14, window_bounds = array<i64: 1, 128>}, {transform_indices = @transform_15, window_bounds = array<i64: 8, 128>}]} {
    %c0 = arith.constant 0 : index
    %c0_0 = arith.constant 0 : index
    %0 = vector.load %arg1[%c0, %c0_0] : memref<8x64xf32, #tpu.memory_space<vmem>>, vector<8x64xf32>
    %c0_1 = arith.constant 0 : index
    %c0_2 = arith.constant 0 : index
    %1 = vector.load %arg2[%c0_1, %c0_2] : memref<64x128xbf16, #tpu.memory_space<vmem>>, vector<64x128xbf16>
    %c0_3 = arith.constant 0 : index
    %c0_4 = arith.constant 0 : index
    %2 = vector.load %arg3[%c0_3, %c0_4] : memref<1x128xf32, #tpu.memory_space<vmem>>, vector<1x128xf32>
    %3 = arith.truncf %0 : vector<8x64xf32> to vector<8x64xbf16>
    %cst = arith.constant dense<0.000000e+00> : vector<8x128xf32>
    %4 = tpu.matmul %3, %1, %cst {dimension_numbers = #tpu.dot_dimension_numbers<[1], [0], [0], [1], [0, 0, 1, 1], [], []>} : vector<8x64xbf16>, vector<64x128xbf16>, vector<8x128xf32> -> vector<8x128xf32>
    %5 = vector.broadcast %2 : vector<1x128xf32> to vector<8x128xf32>
    %6 = arith.addf %4, %5 : vector<8x128xf32>
    %c0_5 = arith.constant 0 : index
    %c0_6 = arith.constant 0 : index
    %7 = vector.load %arg4[%c0_5, %c0_6] : memref<128x128xbf16, #tpu.memory_space<vmem>>, vector<128x128xbf16>
    %c0_7 = arith.constant 0 : index
    %c0_8 = arith.constant 0 : index
    %8 = vector.load %arg5[%c0_7, %c0_8] : memref<1x128xf32, #tpu.memory_space<vmem>>, vector<1x128xf32>
    %c0_9 = arith.constant 0 : index
    %c0_10 = arith.constant 0 : index
    %9 = vector.load %arg6[%c0_9, %c0_10] : memref<128x128xbf16, #tpu.memory_space<vmem>>, vector<128x128xbf16>
    %c0_11 = arith.constant 0 : index
    %c0_12 = arith.constant 0 : index
    %10 = vector.load %arg7[%c0_11, %c0_12] : memref<1x128xf32, #tpu.memory_space<vmem>>, vector<1x128xf32>
    %c0_13 = arith.constant 0 : index
    %c0_14 = arith.constant 0 : index
    %11 = vector.load %arg8[%c0_13, %c0_14] : memref<1x128xf32, #tpu.memory_space<vmem>>, vector<1x128xf32>
    %c0_15 = arith.constant 0 : index
    %c0_16 = arith.constant 0 : index
    %12 = vector.load %arg9[%c0_15, %c0_16] : memref<1x128xf32, #tpu.memory_space<vmem>>, vector<1x128xf32>
    %13 = arith.truncf %6 : vector<8x128xf32> to vector<8x128xbf16>
    %cst_17 = arith.constant dense<0.000000e+00> : vector<8x128xf32>
    %14 = tpu.matmul %13, %7, %cst_17 {dimension_numbers = #tpu.dot_dimension_numbers<[1], [0], [0], [1], [0, 0, 1, 1], [], []>} : vector<8x128xbf16>, vector<128x128xbf16>, vector<8x128xf32> -> vector<8x128xf32>
    %15 = vector.broadcast %8 : vector<1x128xf32> to vector<8x128xf32>
    %16 = arith.addf %14, %15 : vector<8x128xf32>
    %cst_18 = arith.constant 0.000000e+00 : f32
    %17 = vector.broadcast %cst_18 : f32 to vector<8x128xf32>
    %18 = arith.maximumf %16, %17 : vector<8x128xf32>
    %19 = arith.truncf %18 : vector<8x128xf32> to vector<8x128xbf16>
    %cst_19 = arith.constant dense<0.000000e+00> : vector<8x128xf32>
    %20 = tpu.matmul %19, %9, %cst_19 {dimension_numbers = #tpu.dot_dimension_numbers<[1], [0], [0], [1], [0, 0, 1, 1], [], []>} : vector<8x128xbf16>, vector<128x128xbf16>, vector<8x128xf32> -> vector<8x128xf32>
    %21 = vector.broadcast %10 : vector<1x128xf32> to vector<8x128xf32>
    %22 = arith.addf %20, %21 : vector<8x128xf32>
    %23 = arith.addf %6, %22 : vector<8x128xf32>
    %cst_20 = arith.constant dense<0.000000e+00> : vector<8xf32>
    %24 = vector.multi_reduction <add>, %23, %cst_20 [1] : vector<8x128xf32> to vector<8xf32>
    %25 = vector.shape_cast %24 : vector<8xf32> to vector<8x1xf32>
    %cst_21 = arith.constant 1.280000e+02 : f32
    %26 = vector.broadcast %cst_21 : f32 to vector<8x1xf32>
    %27 = arith.divf %25, %26 : vector<8x1xf32>
    %28 = vector.broadcast %27 : vector<8x1xf32> to vector<8x128xf32>
    %29 = arith.subf %23, %28 : vector<8x128xf32>
    %30 = arith.mulf %29, %29 : vector<8x128xf32>
    %cst_22 = arith.constant dense<0.000000e+00> : vector<8xf32>
    %31 = vector.multi_reduction <add>, %30, %cst_22 [1] : vector<8x128xf32> to vector<8xf32>
    %32 = vector.shape_cast %31 : vector<8xf32> to vector<8x1xf32>
    %cst_23 = arith.constant 1.280000e+02 : f32
    %33 = vector.broadcast %cst_23 : f32 to vector<8x1xf32>
    %34 = arith.divf %32, %33 : vector<8x1xf32>
    %35 = vector.broadcast %27 : vector<8x1xf32> to vector<8x128xf32>
    %36 = arith.subf %23, %35 : vector<8x128xf32>
    %cst_24 = arith.constant 9.99999974E-6 : f32
    %37 = vector.broadcast %cst_24 : f32 to vector<8x1xf32>
    %38 = arith.addf %34, %37 : vector<8x1xf32>
    %39 = math.rsqrt %38 : vector<8x1xf32>
    %40 = vector.broadcast %39 : vector<8x1xf32> to vector<8x128xf32>
    %41 = arith.mulf %36, %40 : vector<8x128xf32>
    %42 = vector.broadcast %11 : vector<1x128xf32> to vector<8x128xf32>
    %43 = arith.mulf %41, %42 : vector<8x128xf32>
    %44 = vector.broadcast %12 : vector<1x128xf32> to vector<8x128xf32>
    %45 = arith.addf %43, %44 : vector<8x128xf32>
    %c0_25 = arith.constant 0 : index
    %c0_26 = arith.constant 0 : index
    %46 = vector.load %arg10[%c0_25, %c0_26] : memref<128x128xbf16, #tpu.memory_space<vmem>>, vector<128x128xbf16>
    %c0_27 = arith.constant 0 : index
    %c0_28 = arith.constant 0 : index
    %47 = vector.load %arg11[%c0_27, %c0_28] : memref<1x128xf32, #tpu.memory_space<vmem>>, vector<1x128xf32>
    %c0_29 = arith.constant 0 : index
    %c0_30 = arith.constant 0 : index
    %48 = vector.load %arg12[%c0_29, %c0_30] : memref<128x128xbf16, #tpu.memory_space<vmem>>, vector<128x128xbf16>
    %c0_31 = arith.constant 0 : index
    %c0_32 = arith.constant 0 : index
    %49 = vector.load %arg13[%c0_31, %c0_32] : memref<1x128xf32, #tpu.memory_space<vmem>>, vector<1x128xf32>
    %c0_33 = arith.constant 0 : index
    %c0_34 = arith.constant 0 : index
    %50 = vector.load %arg14[%c0_33, %c0_34] : memref<1x128xf32, #tpu.memory_space<vmem>>, vector<1x128xf32>
    %c0_35 = arith.constant 0 : index
    %c0_36 = arith.constant 0 : index
    %51 = vector.load %arg15[%c0_35, %c0_36] : memref<1x128xf32, #tpu.memory_space<vmem>>, vector<1x128xf32>
    %52 = arith.truncf %45 : vector<8x128xf32> to vector<8x128xbf16>
    %cst_37 = arith.constant dense<0.000000e+00> : vector<8x128xf32>
    %53 = tpu.matmul %52, %46, %cst_37 {dimension_numbers = #tpu.dot_dimension_numbers<[1], [0], [0], [1], [0, 0, 1, 1], [], []>} : vector<8x128xbf16>, vector<128x128xbf16>, vector<8x128xf32> -> vector<8x128xf32>
    %54 = vector.broadcast %47 : vector<1x128xf32> to vector<8x128xf32>
    %55 = arith.addf %53, %54 : vector<8x128xf32>
    %cst_38 = arith.constant 0.000000e+00 : f32
    %56 = vector.broadcast %cst_38 : f32 to vector<8x128xf32>
    %57 = arith.maximumf %55, %56 : vector<8x128xf32>
    %58 = arith.truncf %57 : vector<8x128xf32> to vector<8x128xbf16>
    %cst_39 = arith.constant dense<0.000000e+00> : vector<8x128xf32>
    %59 = tpu.matmul %58, %48, %cst_39 {dimension_numbers = #tpu.dot_dimension_numbers<[1], [0], [0], [1], [0, 0, 1, 1], [], []>} : vector<8x128xbf16>, vector<128x128xbf16>, vector<8x128xf32> -> vector<8x128xf32>
    %60 = vector.broadcast %49 : vector<1x128xf32> to vector<8x128xf32>
    %61 = arith.addf %59, %60 : vector<8x128xf32>
    %62 = arith.addf %45, %61 : vector<8x128xf32>
    %cst_40 = arith.constant dense<0.000000e+00> : vector<8xf32>
    %63 = vector.multi_reduction <add>, %62, %cst_40 [1] : vector<8x128xf32> to vector<8xf32>
    %64 = vector.shape_cast %63 : vector<8xf32> to vector<8x1xf32>
    %cst_41 = arith.constant 1.280000e+02 : f32
    %65 = vector.broadcast %cst_41 : f32 to vector<8x1xf32>
    %66 = arith.divf %64, %65 : vector<8x1xf32>
    %67 = vector.broadcast %66 : vector<8x1xf32> to vector<8x128xf32>
    %68 = arith.subf %62, %67 : vector<8x128xf32>
    %69 = arith.mulf %68, %68 : vector<8x128xf32>
    %cst_42 = arith.constant dense<0.000000e+00> : vector<8xf32>
    %70 = vector.multi_reduction <add>, %69, %cst_42 [1] : vector<8x128xf32> to vector<8xf32>
    %71 = vector.shape_cast %70 : vector<8xf32> to vector<8x1xf32>
    %cst_43 = arith.constant 1.280000e+02 : f32
    %72 = vector.broadcast %cst_43 : f32 to vector<8x1xf32>
    %73 = arith.divf %71, %72 : vector<8x1xf32>
    %74 = vector.broadcast %66 : vector<8x1xf32> to vector<8x128xf32>
    %75 = arith.subf %62, %74 : vector<8x128xf32>
    %cst_44 = arith.constant 9.99999974E-6 : f32
    %76 = vector.broadcast %cst_44 : f32 to vector<8x1xf32>
    %77 = arith.addf %73, %76 : vector<8x1xf32>
    %78 = math.rsqrt %77 : vector<8x1xf32>
    %79 = vector.broadcast %78 : vector<8x1xf32> to vector<8x128xf32>
    %80 = arith.mulf %75, %79 : vector<8x128xf32>
    %81 = vector.broadcast %50 : vector<1x128xf32> to vector<8x128xf32>
    %82 = arith.mulf %80, %81 : vector<8x128xf32>
    %83 = vector.broadcast %51 : vector<1x128xf32> to vector<8x128xf32>
    %84 = arith.addf %82, %83 : vector<8x128xf32>
    %c0_45 = arith.constant 0 : index
    %c0_46 = arith.constant 0 : index
    %85 = vector.load %arg16[%c0_45, %c0_46] : memref<8x128xf32, #tpu.memory_space<vmem>>, vector<8x128xf32>
    tpu.vector_store %arg16[%c0_45, %c0_46], %84 {strides = array<i32>} : memref<8x128xf32, #tpu.memory_space<vmem>>, vector<8x128xf32>,
    return
  }
  func.func @transform_0(%arg0: i32) -> (i32, i32) {
    %c0_i32 = arith.constant 0 : i32
    %c0_i32_0 = arith.constant 0 : i32
    return %arg0, %c0_i32 : i32, i32
  }
  func.func @transform_1(%arg0: i32) -> (i32, i32) {
    %c0_i32 = arith.constant 0 : i32
    %c0_i32_0 = arith.constant 0 : i32
    %c0_i32_1 = arith.constant 0 : i32
    return %c0_i32, %c0_i32_0 : i32, i32
  }
  func.func @transform_2(%arg0: i32) -> (i32, i32) {
    %c0_i32 = arith.constant 0 : i32
    %c0_i32_0 = arith.constant 0 : i32
    %c0_i32_1 = arith.constant 0 : i32
    return %c0_i32, %c0_i32_0 : i32, i32
  }
  func.func @transform_3(%arg0: i32) -> (i32, i32) {
    %c0_i32 = arith.constant 0 : i32
    %c0_i32_0 = arith.constant 0 : i32
    %c0_i32_1 = arith.constant 0 : i32
    return %c0_i32, %c0_i32_0 : i32, i32
  }
  func.func @transform_4(%arg0: i32) -> (i32, i32) {
    %c0_i32 = arith.constant 0 : i32
    %c0_i32_0 = arith.constant 0 : i32
    %c0_i32_1 = arith.constant 0 : i32
    return %c0_i32, %c0_i32_0 : i32, i32
  }
  func.func @transform_5(%arg0: i32) -> (i32, i32) {
    %c0_i32 = arith.constant 0 : i32
    %c0_i32_0 = arith.constant 0 : i32
    %c0_i32_1 = arith.constant 0 : i32
    return %c0_i32, %c0_i32_0 : i32, i32
  }
  func.func @transform_6(%arg0: i32) -> (i32, i32) {
    %c0_i32 = arith.constant 0 : i32
    %c0_i32_0 = arith.constant 0 : i32
    %c0_i32_1 = arith.constant 0 : i32
    return %c0_i32, %c0_i32_0 : i32, i32
  }
  func.func @transform_7(%arg0: i32) -> (i32, i32) {
    %c0_i32 = arith.constant 0 : i32
    %c0_i32_0 = arith.constant 0 : i32
    %c0_i32_1 = arith.constant 0 : i32
    return %c0_i32, %c0_i32_0 : i32, i32
  }
  func.func @transform_8(%arg0: i32) -> (i32, i32) {
    %c0_i32 = arith.constant 0 : i32
    %c0_i32_0 = arith.constant 0 : i32
    %c0_i32_1 = arith.constant 0 : i32
    return %c0_i32, %c0_i32_0 : i32, i32
  }
  func.func @transform_9(%arg0: i32) -> (i32, i32) {
    %c0_i32 = arith.constant 0 : i32
    %c0_i32_0 = arith.constant 0 : i32
    %c0_i32_1 = arith.constant 0 : i32
    return %c0_i32, %c0_i32_0 : i32, i32
  }
  func.func @transform_10(%arg0: i32) -> (i32, i32) {
    %c0_i32 = arith.constant 0 : i32
    %c0_i32_0 = arith.constant 0 : i32
    %c0_i32_1 = arith.constant 0 : i32
    return %c0_i32, %c0_i32_0 : i32, i32
  }
  func.func @transform_11(%arg0: i32) -> (i32, i32) {
    %c0_i32 = arith.constant 0 : i32
    %c0_i32_0 = arith.constant 0 : i32
    %c0_i32_1 = arith.constant 0 : i32
    return %c0_i32, %c0_i32_0 : i32, i32
  }
  func.func @transform_12(%arg0: i32) -> (i32, i32) {
    %c0_i32 = arith.constant 0 : i32
    %c0_i32_0 = arith.constant 0 : i32
    %c0_i32_1 = arith.constant 0 : i32
    return %c0_i32, %c0_i32_0 : i32, i32
  }
  func.func @transform_13(%arg0: i32) -> (i32, i32) {
    %c0_i32 = arith.constant 0 : i32
    %c0_i32_0 = arith.constant 0 : i32
    %c0_i32_1 = arith.constant 0 : i32
    return %c0_i32, %c0_i32_0 : i32, i32
  }
  func.func @transform_14(%arg0: i32) -> (i32, i32) {
    %c0_i32 = arith.constant 0 : i32
    %c0_i32_0 = arith.constant 0 : i32
    %c0_i32_1 = arith.constant 0 : i32
    return %c0_i32, %c0_i32_0 : i32, i32
  }
  func.func @transform_15(%arg0: i32) -> (i32, i32) {
    %c0_i32 = arith.constant 0 : i32
    %c0_i32_0 = arith.constant 0 : i32
    return %arg0, %c0_i32 : i32, i32
  }
}

</mosaic_0001>

<llo_original>
// kernel: tpu_custom_call.1
$region0: #{tpu_custom_call.1}
  #allocation0 [shape = 'u32[]', space=smem, size = 0x4, offset = 0x4, fixed_abs, tag = 'smem constant byte address 0x4 - core index']
  #allocation1 [shape = 'u32[144,128]{1,0:T(1,128)}', space=vmem, size = 0x12000, scoped, tag = 'internal scratch']
  %s0 = inlined_call_operand.hbm [shape: f32[16,64], index: 0, kind: input, shape index: {}]
  %s1 = inlined_call_operand.hbm [shape: bf16[64,128], index: 1, kind: input, shape index: {}]
  %s2 = inlined_call_operand.vmem [shape: f32[1,128], index: 2, kind: input, shape index: {}]
  %s3 = inlined_call_operand.hbm [shape: bf16[128,128], index: 3, kind: input, shape index: {}]
  %s4 = inlined_call_operand.vmem [shape: f32[1,128], index: 4, kind: input, shape index: {}]
  %s5 = inlined_call_operand.hbm [shape: bf16[128,128], index: 5, kind: input, shape index: {}]
  %s6 = inlined_call_operand.vmem [shape: f32[1,128], index: 6, kind: input, shape index: {}]
  %s7 = inlined_call_operand.vmem [shape: f32[1,128], index: 7, kind: input, shape index: {}]
  %s8 = inlined_call_operand.vmem [shape: f32[1,128], index: 8, kind: input, shape index: {}]
  %s9 = inlined_call_operand.hbm [shape: bf16[128,128], index: 9, kind: input, shape index: {}]
  %s10 = inlined_call_operand.vmem [shape: f32[1,128], index: 10, kind: input, shape index: {}]
  %s11 = inlined_call_operand.hbm [shape: bf16[128,128], index: 11, kind: input, shape index: {}]
  %s12 = inlined_call_operand.vmem [shape: f32[1,128], index: 12, kind: input, shape index: {}]
  %s13 = inlined_call_operand.vmem [shape: f32[1,128], index: 13, kind: input, shape index: {}]
  %s14 = inlined_call_operand.vmem [shape: f32[1,128], index: 14, kind: input, shape index: {}]
  %s15 = inlined_call_operand.hbm [shape: f32[16,128], index: 15, kind: output, shape index: {}]
  %s16 = sld [smem:[#allocation0]]
  $region117: #{tpu_custom_call.1} parent=0
    _
  %s18 = ssub.s32 1, %s16
  %s19 = scalar_select 0, %s18, %s16
  $region1: #{tpu_custom_call.1} parent=0
    #allocation2 [shape = 'u8[8192]{0}', space=vmem, size = 0x2000, scoped, tag = 'input window, operand 0']
    #allocation3 [shape = 's32[2]{0}', space=sflag, size = 0x8, scoped, tag = 'scoped memory for tpu_custom_call.1']
    #allocation4 [shape = 's32[2]{0}', space=sflag, size = 0x8, scoped, tag = 'scoped memory for tpu_custom_call.1']
    #allocation5 [shape = 'u8[16384]{0}', space=vmem, size = 0x4000, scoped, tag = 'input window, operand 1, single buffered']
    #allocation6 [shape = 's32[1]{0}', space=sflag, size = 0x4, scoped, tag = 'scoped memory for tpu_custom_call.1']
    #allocation7 [shape = 'u8[32768]{0}', space=vmem, size = 0x8000, scoped, tag = 'input window, operand 3, single buffered']
    #allocation8 [shape = 'u8[32768]{0}', space=vmem, size = 0x8000, scoped, tag = 'input window, operand 5, single buffered']
    #allocation9 [shape = 's32[1]{0}', space=sflag, size = 0x4, scoped, tag = 'scoped memory for tpu_custom_call.1']
    #allocation10 [shape = 'u8[32768]{0}', space=vmem, size = 0x8000, scoped, tag = 'input window, operand 9, single buffered']
    #allocation11 [shape = 'u8[32768]{0}', space=vmem, size = 0x8000, scoped, tag = 'input window, operand 11, single buffered']
    #allocation12 [shape = 's32[1]{0}', space=sflag, size = 0x4, scoped, tag = 'scoped memory for tpu_custom_call.1']
    #allocation13 [shape = 'u8[8192]{0}', space=vmem, size = 0x2000, scoped, tag = 'output window, operand 0']
    %20 = vsyncpa [#allocation3], 0
    %s21 = scalar_lea.sflag [#allocation3], 1
    %22 = vsyncpa %s21, 0
    %23 = vsyncpa [#allocation6], 0
    %24 = vsyncpa [#allocation9], 0
    %25 = vsyncpa [#allocation12], 0
    %26 = vsyncpa [#allocation4], 0
    %s27 = scalar_lea.sflag [#allocation4], 1
    %28 = vsyncpa %s27, 0
    loop: start=0, step=1, limit=4
    $region2: #{tpu_custom_call.1} parent=1 // loop_pre_header
      _
    $region3: #{tpu_custom_call.1} parent=1 // loop_header
      %s30 = sphi 0, %s34
      %p31 = scmp.ge.s32.totalorder %s30, 4
      %s40 = sphi 0, %s42
      %s43 = sphi 0, %s40
      %s44 = sphi 0, %s43
      %s60 = sphi 0, %s44
      %s64 = sphi 0, %s64
      %s66 = sphi 0, %s64
      %s67 = sphi 0, %s66
      %s81 = sphi 0, %s67
      %s85 = sphi 0, %s85
      %s87 = sphi 0, %s85
      %s88 = sphi 0, %s87
      %s102 = sphi 0, %s88
      %s106 = sphi 0, %s106
      %s108 = sphi 0, %s106
      %s109 = sphi 0, %s108
      %s123 = sphi 0, %s109
      %s127 = sphi 0, %s127
      %s129 = sphi 0, %s127
      %s130 = sphi 0, %s129
      %s144 = sphi 0, %s130
      %s148 = sphi 0, %s148
      %s150 = sphi 0, %s148
      %s151 = sphi 0, %s150
      %s165 = sphi 0, %s151
      %s169 = sphi 0, %s169
      %s171 = sphi 0, %s169
      %s172 = sphi 0, %s171
      %s186 = sphi 0, %s172
      %s190 = sphi 0, %s190
      %s192 = sphi 0, %s190
      %s193 = sphi 0, %s192
      %s207 = sphi 0, %s193
      %s211 = sphi 0, %s211
      %s213 = sphi 0, %s211
      %s214 = sphi 0, %s213
      %s228 = sphi 0, %s214
      %s232 = sphi 0, %s232
      %s234 = sphi 0, %s232
      %s235 = sphi 0, %s234
      %s249 = sphi 0, %s235
      %s253 = sphi 0, %s253
      %s255 = sphi 0, %s253
      %s256 = sphi 0, %s255
      %s270 = sphi 0, %s256
      %s274 = sphi 0, %s274
      %s276 = sphi 0, %s274
      %s277 = sphi 0, %s276
      %s291 = sphi 0, %s277
      %s295 = sphi 0, %s295
      %s297 = sphi 0, %s295
      %s298 = sphi 0, %s297
      %s312 = sphi 0, %s298
      %s316 = sphi 0, %s316
      %s318 = sphi 0, %s316
      %s319 = sphi 0, %s318
      %s333 = sphi 0, %s319
      %s337 = sphi 0, %s337
      %s339 = sphi 0, %s337
      %s340 = sphi 0, %s339
      %s354 = sphi 0, %s340
      %s360 = sphi 0, %s362
      %s363 = sphi 0, %s360
      %s364 = sphi 0, %s363
      %s380 = sphi 0, %s364
    $region4: #{tpu_custom_call.1} parent=1 // loop_header_branch
      %33 = sbr.rel (%p31) target = $region8
    $region5: #{tpu_custom_call.1} parent=1 // loop_body
      %s35 = ssub.s32 %s30, 1
      %s36 = ssub.s32 %s30, 2
      %s37 = sadd.s32 %s30, 1
      %s38 = ssub.s32 %s30, %s37
      %p39 = scmp.eq.s32.totalorder %s38, 0
      %s41 = sadd.s32 %s40, 1
      %s42 = scalar_select %p39, %s40, %s41
      %p45 = pneg %p39
      %p46 = scmp.eq.s32.totalorder %s30, 1
      %p47 = por %p45, %p46
      %p48 = scmp.ne.s32.totalorder %s40, %s43
      %p49 = scmp.eq.s32.totalorder %s30, 0
      %p50 = por %p48, %p49
      %p51 = scmp.ne.s32.totalorder %s40, %s43
      %p52 = scmp.eq.s32.totalorder %s35, 1
      %p53 = por %p51, %p52
      %p54 = scmp.ne.s32.totalorder %s43, %s44
      %p55 = scmp.eq.s32.totalorder %s35, 0
      %p56 = por %p54, %p55
      %p57 = scmp.ne.s32.totalorder %s43, %s44
      %p58 = scmp.eq.s32.totalorder %s36, 1
      %p59 = por %p57, %p58
      %p61 = scmp.ne.s32.totalorder %s44, %s60
      %p62 = scmp.eq.s32.totalorder %s36, 0
      %p63 = por %p61, %p62
      %s65 = sadd.s32 %s64, 1
      %p68 = scmp.eq.s32.totalorder %s30, 1
      %p69 = scmp.ne.s32.totalorder %s64, %s66
      %p70 = scmp.eq.s32.totalorder %s30, 0
      %p71 = por %p69, %p70
      %p72 = scmp.ne.s32.totalorder %s64, %s66
      %p73 = scmp.eq.s32.totalorder %s35, 1
      %p74 = por %p72, %p73
      %p75 = scmp.ne.s32.totalorder %s66, %s67
      %p76 = scmp.eq.s32.totalorder %s35, 0
      %p77 = por %p75, %p76
      %p78 = scmp.ne.s32.totalorder %s66, %s67
      %p79 = scmp.eq.s32.totalorder %s36, 1
      %p80 = por %p78, %p79
      %p82 = scmp.ne.s32.totalorder %s67, %s81
      %p83 = scmp.eq.s32.totalorder %s36, 0
      %p84 = por %p82, %p83
      %s86 = sadd.s32 %s85, 1
      %p89 = scmp.eq.s32.totalorder %s30, 1
      %p90 = scmp.ne.s32.totalorder %s85, %s87
      %p91 = scmp.eq.s32.totalorder %s30, 0
      %p92 = por %p90, %p91
      %p93 = scmp.ne.s32.totalorder %s85, %s87
      %p94 = scmp.eq.s32.totalorder %s35, 1
      %p95 = por %p93, %p94
      %p96 = scmp.ne.s32.totalorder %s87, %s88
      %p97 = scmp.eq.s32.totalorder %s35, 0
      %p98 = por %p96, %p97
      %p99 = scmp.ne.s32.totalorder %s87, %s88
      %p100 = scmp.eq.s32.totalorder %s36, 1
      %p101 = por %p99, %p100
      %p103 = scmp.ne.s32.totalorder %s88, %s102
      %p104 = scmp.eq.s32.totalorder %s36, 0
      %p105 = por %p103, %p104
      %s107 = sadd.s32 %s106, 1
      %p110 = scmp.eq.s32.totalorder %s30, 1
      %p111 = scmp.ne.s32.totalorder %s106, %s108
      %p112 = scmp.eq.s32.totalorder %s30, 0
      %p113 = por %p111, %p112
      %p114 = scmp.ne.s32.totalorder %s106, %s108
      %p115 = scmp.eq.s32.totalorder %s35, 1
      %p116 = por %p114, %p115
      %p117 = scmp.ne.s32.totalorder %s108, %s109
      %p118 = scmp.eq.s32.totalorder %s35, 0
      %p119 = por %p117, %p118
      %p120 = scmp.ne.s32.totalorder %s108, %s109
      %p121 = scmp.eq.s32.totalorder %s36, 1
      %p122 = por %p120, %p121
      %p124 = scmp.ne.s32.totalorder %s109, %s123
      %p125 = scmp.eq.s32.totalorder %s36, 0
      %p126 = por %p124, %p125
      %s128 = sadd.s32 %s127, 1
      %p131 = scmp.eq.s32.totalorder %s30, 1
      %p132 = scmp.ne.s32.totalorder %s127, %s129
      %p133 = scmp.eq.s32.totalorder %s30, 0
      %p134 = por %p132, %p133
      %p135 = scmp.ne.s32.totalorder %s127, %s129
      %p136 = scmp.eq.s32.totalorder %s35, 1
      %p137 = por %p135, %p136
      %p138 = scmp.ne.s32.totalorder %s129, %s130
      %p139 = scmp.eq.s32.totalorder %s35, 0
      %p140 = por %p138, %p139
      %p141 = scmp.ne.s32.totalorder %s129, %s130
      %p142 = scmp.eq.s32.totalorder %s36, 1
      %p143 = por %p141, %p142
      %p145 = scmp.ne.s32.totalorder %s130, %s144
      %p146 = scmp.eq.s32.totalorder %s36, 0
      %p147 = por %p145, %p146
      %s149 = sadd.s32 %s148, 1
      %p152 = scmp.eq.s32.totalorder %s30, 1
      %p153 = scmp.ne.s32.totalorder %s148, %s150
      %p154 = scmp.eq.s32.totalorder %s30, 0
      %p155 = por %p153, %p154
      %p156 = scmp.ne.s32.totalorder %s148, %s150
      %p157 = scmp.eq.s32.totalorder %s35, 1
      %p158 = por %p156, %p157
      %p159 = scmp.ne.s32.totalorder %s150, %s151
      %p160 = scmp.eq.s32.totalorder %s35, 0
      %p161 = por %p159, %p160
      %p162 = scmp.ne.s32.totalorder %s150, %s151
      %p163 = scmp.eq.s32.totalorder %s36, 1
      %p164 = por %p162, %p163
      %p166 = scmp.ne.s32.totalorder %s151, %s165
      %p167 = scmp.eq.s32.totalorder %s36, 0
      %p168 = por %p166, %p167
      %s170 = sadd.s32 %s169, 1
      %p173 = scmp.eq.s32.totalorder %s30, 1
      %p174 = scmp.ne.s32.totalorder %s169, %s171
      %p175 = scmp.eq.s32.totalorder %s30, 0
      %p176 = por %p174, %p175
      %p177 = scmp.ne.s32.totalorder %s169, %s171
      %p178 = scmp.eq.s32.totalorder %s35, 1
      %p179 = por %p177, %p178
      %p180 = scmp.ne.s32.totalorder %s171, %s172
      %p181 = scmp.eq.s32.totalorder %s35, 0
      %p182 = por %p180, %p181
      %p183 = scmp.ne.s32.totalorder %s171, %s172
      %p184 = scmp.eq.s32.totalorder %s36, 1
      %p185 = por %p183, %p184
      %p187 = scmp.ne.s32.totalorder %s172, %s186
      %p188 = scmp.eq.s32.totalorder %s36, 0
      %p189 = por %p187, %p188
      %s191 = sadd.s32 %s190, 1
      %p194 = scmp.eq.s32.totalorder %s30, 1
      %p195 = scmp.ne.s32.totalorder %s190, %s192
      %p196 = scmp.eq.s32.totalorder %s30, 0
      %p197 = por %p195, %p196
      %p198 = scmp.ne.s32.totalorder %s190, %s192
      %p199 = scmp.eq.s32.totalorder %s35, 1
      %p200 = por %p198, %p199
      %p201 = scmp.ne.s32.totalorder %s192, %s193
      %p202 = scmp.eq.s32.totalorder %s35, 0
      %p203 = por %p201, %p202
      %p204 = scmp.ne.s32.totalorder %s192, %s193
      %p205 = scmp.eq.s32.totalorder %s36, 1
      %p206 = por %p204, %p205
      %p208 = scmp.ne.s32.totalorder %s193, %s207
      %p209 = scmp.eq.s32.totalorder %s36, 0
      %p210 = por %p208, %p209
      %s212 = sadd.s32 %s211, 1
      %p215 = scmp.eq.s32.totalorder %s30, 1
      %p216 = scmp.ne.s32.totalorder %s211, %s213
      %p217 = scmp.eq.s32.totalorder %s30, 0
      %p218 = por %p216, %p217
      %p219 = scmp.ne.s32.totalorder %s211, %s213
      %p220 = scmp.eq.s32.totalorder %s35, 1
      %p221 = por %p219, %p220
      %p222 = scmp.ne.s32.totalorder %s213, %s214
      %p223 = scmp.eq.s32.totalorder %s35, 0
      %p224 = por %p222, %p223
      %p225 = scmp.ne.s32.totalorder %s213, %s214
      %p226 = scmp.eq.s32.totalorder %s36, 1
      %p227 = por %p225, %p226
      %p229 = scmp.ne.s32.totalorder %s214, %s228
      %p230 = scmp.eq.s32.totalorder %s36, 0
      %p231 = por %p229, %p230
      %s233 = sadd.s32 %s232, 1
      %p236 = scmp.eq.s32.totalorder %s30, 1
      %p237 = scmp.ne.s32.totalorder %s232, %s234
      %p238 = scmp.eq.s32.totalorder %s30, 0
      %p239 = por %p237, %p238
      %p240 = scmp.ne.s32.totalorder %s232, %s234
      %p241 = scmp.eq.s32.totalorder %s35, 1
      %p242 = por %p240, %p241
      %p243 = scmp.ne.s32.totalorder %s234, %s235
      %p244 = scmp.eq.s32.totalorder %s35, 0
      %p245 = por %p243, %p244
      %p246 = scmp.ne.s32.totalorder %s234, %s235
      %p247 = scmp.eq.s32.totalorder %s36, 1
      %p248 = por %p246, %p247
      %p250 = scmp.ne.s32.totalorder %s235, %s249
      %p251 = scmp.eq.s32.totalorder %s36, 0
      %p252 = por %p250, %p251
      %s254 = sadd.s32 %s253, 1
      %p257 = scmp.eq.s32.totalorder %s30, 1
      %p258 = scmp.ne.s32.totalorder %s253, %s255
      %p259 = scmp.eq.s32.totalorder %s30, 0
      %p260 = por %p258, %p259
      %p261 = scmp.ne.s32.totalorder %s253, %s255
      %p262 = scmp.eq.s32.totalorder %s35, 1
      %p263 = por %p261, %p262
      %p264 = scmp.ne.s32.totalorder %s255, %s256
      %p265 = scmp.eq.s32.totalorder %s35, 0
      %p266 = por %p264, %p265
      %p267 = scmp.ne.s32.totalorder %s255, %s256
      %p268 = scmp.eq.s32.totalorder %s36, 1
      %p269 = por %p267, %p268
      %p271 = scmp.ne.s32.totalorder %s256, %s270
      %p272 = scmp.eq.s32.totalorder %s36, 0
      %p273 = por %p271, %p272
      %s275 = sadd.s32 %s274, 1
      %p278 = scmp.eq.s32.totalorder %s30, 1
      %p279 = scmp.ne.s32.totalorder %s274, %s276
      %p280 = scmp.eq.s32.totalorder %s30, 0
      %p281 = por %p279, %p280
      %p282 = scmp.ne.s32.totalorder %s274, %s276
      %p283 = scmp.eq.s32.totalorder %s35, 1
      %p284 = por %p282, %p283
      %p285 = scmp.ne.s32.totalorder %s276, %s277
      %p286 = scmp.eq.s32.totalorder %s35, 0
      %p287 = por %p285, %p286
      %p288 = scmp.ne.s32.totalorder %s276, %s277
      %p289 = scmp.eq.s32.totalorder %s36, 1
      %p290 = por %p288, %p289
      %p292 = scmp.ne.s32.totalorder %s277, %s291
      %p293 = scmp.eq.s32.totalorder %s36, 0
      %p294 = por %p292, %p293
      %s296 = sadd.s32 %s295, 1
      %p299 = scmp.eq.s32.totalorder %s30, 1
      %p300 = scmp.ne.s32.totalorder %s295, %s297
      %p301 = scmp.eq.s32.totalorder %s30, 0
      %p302 = por %p300, %p301
      %p303 = scmp.ne.s32.totalorder %s295, %s297
      %p304 = scmp.eq.s32.totalorder %s35, 1
      %p305 = por %p303, %p304
      %p306 = scmp.ne.s32.totalorder %s297, %s298
      %p307 = scmp.eq.s32.totalorder %s35, 0
      %p308 = por %p306, %p307
      %p309 = scmp.ne.s32.totalorder %s297, %s298
      %p310 = scmp.eq.s32.totalorder %s36, 1
      %p311 = por %p309, %p310
      %p313 = scmp.ne.s32.totalorder %s298, %s312
      %p314 = scmp.eq.s32.totalorder %s36, 0
      %p315 = por %p313, %p314
      %s317 = sadd.s32 %s316, 1
      %p320 = scmp.eq.s32.totalorder %s30, 1
      %p321 = scmp.ne.s32.totalorder %s316, %s318
      %p322 = scmp.eq.s32.totalorder %s30, 0
      %p323 = por %p321, %p322
      %p324 = scmp.ne.s32.totalorder %s316, %s318
      %p325 = scmp.eq.s32.totalorder %s35, 1
      %p326 = por %p324, %p325
      %p327 = scmp.ne.s32.totalorder %s318, %s319
      %p328 = scmp.eq.s32.totalorder %s35, 0
      %p329 = por %p327, %p328
      %p330 = scmp.ne.s32.totalorder %s318, %s319
      %p331 = scmp.eq.s32.totalorder %s36, 1
      %p332 = por %p330, %p331
      %p334 = scmp.ne.s32.totalorder %s319, %s333
      %p335 = scmp.eq.s32.totalorder %s36, 0
      %p336 = por %p334, %p335
      %s338 = sadd.s32 %s337, 1
      %p341 = scmp.eq.s32.totalorder %s30, 1
      %p342 = scmp.ne.s32.totalorder %s337, %s339
      %p343 = scmp.eq.s32.totalorder %s30, 0
      %p344 = por %p342, %p343
      %p345 = scmp.ne.s32.totalorder %s337, %s339
      %p346 = scmp.eq.s32.totalorder %s35, 1
      %p347 = por %p345, %p346
      %p348 = scmp.ne.s32.totalorder %s339, %s340
      %p349 = scmp.eq.s32.totalorder %s35, 0
      %p350 = por %p348, %p349
      %p351 = scmp.ne.s32.totalorder %s339, %s340
      %p352 = scmp.eq.s32.totalorder %s36, 1
      %p353 = por %p351, %p352
      %p355 = scmp.ne.s32.totalorder %s340, %s354
      %p356 = scmp.eq.s32.totalorder %s36, 0
      %p357 = por %p355, %p356
      %s358 = ssub.s32 %s30, %s37
      %p359 = scmp.eq.s32.totalorder %s358, 0
      %s361 = sadd.s32 %s360, 1
      %s362 = scalar_select %p359, %s360, %s361
      %p365 = pneg %p359
      %p366 = scmp.eq.s32.totalorder %s30, 1
      %p367 = por %p365, %p366
      %p368 = scmp.ne.s32.totalorder %s360, %s363
      %p369 = scmp.eq.s32.totalorder %s30, 0
      %p370 = por %p368, %p369
      %p371 = scmp.ne.s32.totalorder %s360, %s363
      %p372 = scmp.eq.s32.totalorder %s35, 1
      %p373 = por %p371, %p372
      %p374 = scmp.ne.s32.totalorder %s363, %s364
      %p375 = scmp.eq.s32.totalorder %s35, 0
      %p376 = por %p374, %p375
      %p377 = scmp.ne.s32.totalorder %s363, %s364
      %p378 = scmp.eq.s32.totalorder %s36, 1
      %p379 = por %p377, %p378
      %p381 = scmp.ne.s32.totalorder %s364, %s380
      %p382 = scmp.eq.s32.totalorder %s36, 0
      %p383 = por %p381, %p382
      %p384 = scmp.le.s32.totalorder 1, %s30
      %p385 = scmp.lt.s32.totalorder %s30, 3
      %p386 = pnand %p384, %p385
      %p387 = pneg %p386
      // Predicated region
      $region9: #{tpu_custom_call.1} parent=5 // pred_check
        _
      $region10: #{tpu_custom_call.1} parent=5 // pred_check_branch
        %389 = sbr.rel (%p386) target = $region12
      $region11: #{tpu_custom_call.1} parent=5 // pred_region
        %s390 = ssub.s32 %s30, 1
        // Predicated region
        $region13: #{tpu_custom_call.1} parent=11 // pred_check
          %p391 = pneg %p77
        $region14: #{tpu_custom_call.1} parent=11 // pred_check_branch
          %393 = sbr.rel (%p391) target = $region16
        $region15: #{tpu_custom_call.1} parent=11 // pred_region
          %s395 = ssub.s32 512, 512
          %396 = vsyncadd [#allocation6], %s395
          %s397 = sshll.u32 [#allocation5], 4
          %s398 = int_to_ptr.vmem [resolvable:$true] %s397
          %403 = dma.hbm_to_vmem [thread:$0]  %s1, 512, %s398, [#allocation6], 64, 64, 4
        $region16: #{tpu_custom_call.1} parent=11 // pred_fallthru
          _
        // Predicated region
        $region17: #{tpu_custom_call.1} parent=11 // pred_check
          %p404 = pneg %p98
        $region18: #{tpu_custom_call.1} parent=11 // pred_check_branch
          %406 = sbr.rel (%p404) target = $region20
        $region19: #{tpu_custom_call.1} parent=11 // pred_region
          _
        $region20: #{tpu_custom_call.1} parent=11 // pred_fallthru
          _
        // Predicated region
        $region21: #{tpu_custom_call.1} parent=11 // pred_check
          %p407 = pneg %p119
        $region22: #{tpu_custom_call.1} parent=11 // pred_check_branch
          %409 = sbr.rel (%p407) target = $region24
        $region23: #{tpu_custom_call.1} parent=11 // pred_region
          %s411 = ssub.s32 1024, 1024
          %412 = vsyncadd [#allocation6], %s411
          %s413 = sshll.u32 [#allocation7], 4
          %s414 = int_to_ptr.vmem [resolvable:$true] %s413
          %419 = dma.hbm_to_vmem [thread:$0]  %s3, 1024, %s414, [#allocation6], 64, 64, 4
        $region24: #{tpu_custom_call.1} parent=11 // pred_fallthru
          _
        // Predicated region
        $region25: #{tpu_custom_call.1} parent=11 // pred_check
          %p420 = pneg %p140
        $region26: #{tpu_custom_call.1} parent=11 // pred_check_branch
          %422 = sbr.rel (%p420) target = $region28
        $region27: #{tpu_custom_call.1} parent=11 // pred_region
          _
        $region28: #{tpu_custom_call.1} parent=11 // pred_fallthru
          _
        // Predicated region
        $region29: #{tpu_custom_call.1} parent=11 // pred_check
          %p423 = pneg %p161
        $region30: #{tpu_custom_call.1} parent=11 // pred_check_branch
          %425 = sbr.rel (%p423) target = $region32
        $region31: #{tpu_custom_call.1} parent=11 // pred_region
          %s427 = ssub.s32 1024, 1024
          %428 = vsyncadd [#allocation9], %s427
          %s429 = sshll.u32 [#allocation8], 4
          %s430 = int_to_ptr.vmem [resolvable:$true] %s429
          %435 = dma.hbm_to_vmem [thread:$0]  %s5, 1024, %s430, [#allocation9], 64, 64, 4
        $region32: #{tpu_custom_call.1} parent=11 // pred_fallthru
          _
        // Predicated region
        $region33: #{tpu_custom_call.1} parent=11 // pred_check
          %p436 = pneg %p182
        $region34: #{tpu_custom_call.1} parent=11 // pred_check_branch
          %438 = sbr.rel (%p436) target = $region36
        $region35: #{tpu_custom_call.1} parent=11 // pred_region
          _
        $region36: #{tpu_custom_call.1} parent=11 // pred_fallthru
          _
        // Predicated region
        $region37: #{tpu_custom_call.1} parent=11 // pred_check
          %p439 = pneg %p203
        $region38: #{tpu_custom_call.1} parent=11 // pred_check_branch
          %441 = sbr.rel (%p439) target = $region40
        $region39: #{tpu_custom_call.1} parent=11 // pred_region
          _
        $region40: #{tpu_custom_call.1} parent=11 // pred_fallthru
          _
        // Predicated region
        $region41: #{tpu_custom_call.1} parent=11 // pred_check
          %p442 = pneg %p224
        $region42: #{tpu_custom_call.1} parent=11 // pred_check_branch
          %444 = sbr.rel (%p442) target = $region44
        $region43: #{tpu_custom_call.1} parent=11 // pred_region
          _
        $region44: #{tpu_custom_call.1} parent=11 // pred_fallthru
          _
        // Predicated region
        $region45: #{tpu_custom_call.1} parent=11 // pred_check
          %p445 = pneg %p245
        $region46: #{tpu_custom_call.1} parent=11 // pred_check_branch
          %447 = sbr.rel (%p445) target = $region48
        $region47: #{tpu_custom_call.1} parent=11 // pred_region
          %s449 = ssub.s32 1024, 1024
          %450 = vsyncadd [#allocation9], %s449
          %s451 = sshll.u32 [#allocation10], 4
          %s452 = int_to_ptr.vmem [resolvable:$true] %s451
          %457 = dma.hbm_to_vmem [thread:$0]  %s9, 1024, %s452, [#allocation9], 64, 64, 4
        $region48: #{tpu_custom_call.1} parent=11 // pred_fallthru
          _
        // Predicated region
        $region49: #{tpu_custom_call.1} parent=11 // pred_check
          %p458 = pneg %p266
        $region50: #{tpu_custom_call.1} parent=11 // pred_check_branch
          %460 = sbr.rel (%p458) target = $region52
        $region51: #{tpu_custom_call.1} parent=11 // pred_region
          _
        $region52: #{tpu_custom_call.1} parent=11 // pred_fallthru
          _
        // Predicated region
        $region53: #{tpu_custom_call.1} parent=11 // pred_check
          %p461 = pneg %p287
        $region54: #{tpu_custom_call.1} parent=11 // pred_check_branch
          %463 = sbr.rel (%p461) target = $region56
        $region55: #{tpu_custom_call.1} parent=11 // pred_region
          %s465 = ssub.s32 1024, 1024
          %466 = vsyncadd [#allocation12], %s465
          %s467 = sshll.u32 [#allocation11], 4
          %s468 = int_to_ptr.vmem [resolvable:$true] %s467
          %473 = dma.hbm_to_vmem [thread:$0]  %s11, 1024, %s468, [#allocation12], 64, 64, 4
        $region56: #{tpu_custom_call.1} parent=11 // pred_fallthru
          _
        // Predicated region
        $region57: #{tpu_custom_call.1} parent=11 // pred_check
          %p474 = pneg %p308
        $region58: #{tpu_custom_call.1} parent=11 // pred_check_branch
          %476 = sbr.rel (%p474) target = $region60
        $region59: #{tpu_custom_call.1} parent=11 // pred_region
          _
        $region60: #{tpu_custom_call.1} parent=11 // pred_fallthru
          _
        // Predicated region
        $region61: #{tpu_custom_call.1} parent=11 // pred_check
          %p477 = pneg %p329
        $region62: #{tpu_custom_call.1} parent=11 // pred_check_branch
          %479 = sbr.rel (%p477) target = $region64
        $region63: #{tpu_custom_call.1} parent=11 // pred_region
          _
        $region64: #{tpu_custom_call.1} parent=11 // pred_fallthru
          _
        // Predicated region
        $region65: #{tpu_custom_call.1} parent=11 // pred_check
          %p480 = pneg %p350
        $region66: #{tpu_custom_call.1} parent=11 // pred_check_branch
          %482 = sbr.rel (%p480) target = $region68
        $region67: #{tpu_custom_call.1} parent=11 // pred_region
          _
        $region68: #{tpu_custom_call.1} parent=11 // pred_fallthru
          _
      $region12: #{tpu_custom_call.1} parent=5 // pred_fallthru
        _
      %p483 = scmp.lt.s32.totalorder %s30, 2
      // Predicated region
      $region69: #{tpu_custom_call.1} parent=5 // pred_check
        %p484 = pneg %p483
      $region70: #{tpu_custom_call.1} parent=5 // pred_check_branch
        %486 = sbr.rel (%p484) target = $region72
      $region71: #{tpu_custom_call.1} parent=5 // pred_region
        // Predicated region
        $region73: #{tpu_custom_call.1} parent=71 // pred_check
          %p487 = pneg %p50
        $region74: #{tpu_custom_call.1} parent=71 // pred_check_branch
          %489 = sbr.rel (%p487) target = $region76
        $region75: #{tpu_custom_call.1} parent=71 // pred_region
          %s490 = sand.u32 %s40, 1
          %s491 = scalar_lea.sflag [#allocation3], %s490
          %s492 = sand.u32 %s40, 1
          %s493 = smul.addr %s492, 8
          %s494 = scalar_lea.vmem [#allocation2], %s493
          %s496 = ssub.s32 128, 128
          %497 = vsyncadd %s491, %s496
          %s498 = smul.addr %s30, 128
          %s499 = scalar_lea.hbm %s0, %s498
          %s501 = sshll.u32 %s494, 4
          %s502 = int_to_ptr.vmem [resolvable:$true] %s501
          %504 = dma.hbm_to_vmem [thread:$0]  %s499, 128, %s502, %s491
        $region76: #{tpu_custom_call.1} parent=71 // pred_fallthru
          _
      $region72: #{tpu_custom_call.1} parent=5 // pred_fallthru
        _
      %p505 = scmp.le.s32.totalorder 1, %s30
      %p506 = scmp.lt.s32.totalorder %s30, 3
      %p507 = pnand %p505, %p506
      %p508 = pneg %p507
      // Predicated region
      $region77: #{tpu_custom_call.1} parent=5 // pred_check
        _
      $region78: #{tpu_custom_call.1} parent=5 // pred_check_branch
        %510 = sbr.rel (%p507) target = $region80
      $region79: #{tpu_custom_call.1} parent=5 // pred_region
        %s511 = ssub.s32 %s30, 1
        %s512 = sand.u32 %s43, 1
        %s513 = scalar_lea.sflag [#allocation3], %s512
        %s514 = sand.u32 %s43, 1
        %s515 = smul.addr %s514, 8
        %s516 = scalar_lea.vmem [#allocation2], %s515
        // Predicated region
        $region81: #{tpu_custom_call.1} parent=79 // pred_check
          %p517 = pneg %p56
        $region82: #{tpu_custom_call.1} parent=79 // pred_check_branch
          %519 = sbr.rel (%p517) target = $region84
        $region83: #{tpu_custom_call.1} parent=79 // pred_region
          %520 = dma.done %s513, 128
        $region84: #{tpu_custom_call.1} parent=79 // pred_fallthru
          _
        // Predicated region
        $region85: #{tpu_custom_call.1} parent=79 // pred_check
          %p521 = pneg %p77
        $region86: #{tpu_custom_call.1} parent=79 // pred_check_branch
          %523 = sbr.rel (%p521) target = $region88
        $region87: #{tpu_custom_call.1} parent=79 // pred_region
          %524 = dma.done [#allocation6], 512
        $region88: #{tpu_custom_call.1} parent=79 // pred_fallthru
          _
        // Predicated region
        $region89: #{tpu_custom_call.1} parent=79 // pred_check
          %p525 = pneg %p119
        $region90: #{tpu_custom_call.1} parent=79 // pred_check_branch
          %527 = sbr.rel (%p525) target = $region92
        $region91: #{tpu_custom_call.1} parent=79 // pred_region
          %528 = dma.done [#allocation6], 1024
        $region92: #{tpu_custom_call.1} parent=79 // pred_fallthru
          _
        // Predicated region
        $region93: #{tpu_custom_call.1} parent=79 // pred_check
          %p529 = pneg %p161
        $region94: #{tpu_custom_call.1} parent=79 // pred_check_branch
          %531 = sbr.rel (%p529) target = $region96
        $region95: #{tpu_custom_call.1} parent=79 // pred_region
          %532 = dma.done [#allocation9], 1024
        $region96: #{tpu_custom_call.1} parent=79 // pred_fallthru
          _
        // Predicated region
        $region97: #{tpu_custom_call.1} parent=79 // pred_check
          %p533 = pneg %p245
        $region98: #{tpu_custom_call.1} parent=79 // pred_check_branch
          %535 = sbr.rel (%p533) target = $region100
        $region99: #{tpu_custom_call.1} parent=79 // pred_region
          %536 = dma.done [#allocation9], 1024
        $region100: #{tpu_custom_call.1} parent=79 // pred_fallthru
          _
        // Predicated region
        $region101: #{tpu_custom_call.1} parent=79 // pred_check
          %p537 = pneg %p287
        $region102: #{tpu_custom_call.1} parent=79 // pred_check_branch
          %539 = sbr.rel (%p537) target = $region104
        $region103: #{tpu_custom_call.1} parent=79 // pred_region
          %540 = dma.done [#allocation12], 1024
        $region104: #{tpu_custom_call.1} parent=79 // pred_fallthru
          _
        %s541 = sand.u32 %s43, 1
        %s542 = scalar_lea.sflag [#allocation3], %s541
        %s543 = sand.u32 %s43, 1
        %s544 = smul.addr %s543, 8
        %s545 = scalar_lea.vmem [#allocation2], %s544
        %p546 = pneg %p56
        %p547 = pneg %p53
        %p548 = pneg %p77
        %p549 = pneg %p74
        %p550 = pneg %p98
        %p551 = pneg %p95
        %p552 = pneg %p119
        %p553 = pneg %p116
        %p554 = pneg %p140
        %p555 = pneg %p137
        %p556 = pneg %p161
        %p557 = pneg %p158
        %p558 = pneg %p182
        %p559 = pneg %p179
        %p560 = pneg %p203
        %p561 = pneg %p200
        %p562 = pneg %p224
        %p563 = pneg %p221
        %p564 = pneg %p245
        %p565 = pneg %p242
        %p566 = pneg %p266
        %p567 = pneg %p263
        %p568 = pneg %p287
        %p569 = pneg %p284
        %p570 = pneg %p308
        %p571 = pneg %p305
        %p572 = pneg %p329
        %p573 = pneg %p326
        %p574 = pneg %p350
        %p575 = pneg %p347
        %p576 = pneg %p376
        %p577 = pneg %p373
        %s578 = sand.u32 %s363, 1
        %s579 = scalar_lea.sflag [#allocation4], %s578
        %s580 = sand.u32 %s363, 1
        %s581 = smul.addr %s580, 8
        %s582 = scalar_lea.vmem [#allocation13], %s581
        %v584 = vld [vmem:[%s516] sm:$0xff]
        %v585 = vld [vmem:[#allocation5] sm:$0xf]
        %v586 = vld [vmem:[#allocation5 + $0x4] sm:$0xf]
        %v587 = vld [vmem:[#allocation5 + $0x8] sm:$0xf]
        %v588 = vld [vmem:[#allocation5 + $0xc] sm:$0xf]
        %v589 = vld [vmem:[#allocation5 + $0x10] sm:$0xf]
        %v590 = vld [vmem:[#allocation5 + $0x14] sm:$0xf]
        %v591 = vld [vmem:[#allocation5 + $0x18] sm:$0xf]
        %v592 = vld [vmem:[#allocation5 + $0x1c] sm:$0xf]
        %v593 = vld [vmem:[%s2] sm:$0x1]
        %v594 = vpack.c.bf16 %v584, %v584
        %v596 = vlaneseq
        %v597 = vshrl.u32 %v596, 7
        %v598 = vsub.s32 0, %v597
        %v599 = vrot.slane %v593, %v598
        %v609 = vunpack.c.l.b16 %v585
        %v610 = vunpack.c.l.b16 %v586
        %v611 = vunpack.c.l.b16 %v587
        %v612 = vunpack.c.l.b16 %v588
        %v613 = vunpack.c.l.b16 %v589
        %v614 = vunpack.c.l.b16 %v590
        %v615 = vunpack.c.l.b16 %v591
        %v616 = vunpack.c.l.b16 %v592
        %v617 = vpack.c.b16 %v610, %v609
        %v618 = vpack.c.b16 %v612, %v611
        %v619 = vpack.c.b16 %v614, %v613
        %v620 = vpack.c.b16 %v616, %v615
        %vm625 = vcmask 523264
        %v627 = vsel %vm625, %v594, 0
        %629 = vmatprep.subr.bf16.mxu0 0
        %630 = vmatpush1.bf16.msra.mxu0 0
        %631 = vmatprep.subr.bf16.mxu0 0
        %632 = vmatpush1.bf16.msra.mxu0 0
        %633 = vmatprep.subr.bf16.mxu0 0
        %634 = vmatpush1.bf16.msra.mxu0 0
        %635 = vmatprep.subr.bf16.mxu0 0
        %636 = vmatpush1.bf16.msra.mxu0 0
        %637 = vmatprep.subr.bf16.mxu0 0
        %638 = vmatpush1.bf16.msra.mxu0 %v620
        %639 = vmatprep.subr.bf16.mxu0 0
        %640 = vmatpush1.bf16.msra.mxu0 %v619
        %641 = vmatprep.subr.bf16.mxu0 0
        %642 = vmatpush1.bf16.msra.mxu0 %v618
        %643 = vmatprep.subr.bf16.mxu0 0
        %644 = vmatpush1.bf16.msra.mxu0 %v617
        %645 = vmatprep.subr.bf16.mxu0 0
        %646 = vmatpush2.bf16.msra.mxu0 0
        %647 = vmatprep.subr.bf16.mxu0 0
        %648 = vmatpush2.bf16.msra.mxu0 0
        %649 = vmatprep.subr.bf16.mxu0 0
        %650 = vmatpush2.bf16.msra.mxu0 0
        %651 = vmatprep.subr.bf16.mxu0 0
        %652 = vmatpush2.bf16.msra.mxu0 0
        %653 = vmatprep.subr.bf16.mxu0 0
        %654 = vmatpush2.bf16.msra.mxu0 0
        %655 = vmatprep.subr.bf16.mxu0 0
        %656 = vmatpush2.bf16.msra.mxu0 0
        %657 = vmatprep.subr.bf16.mxu0 0
        %658 = vmatpush2.bf16.msra.mxu0 0
        %659 = vmatprep.subr.bf16.mxu0 0
        %660 = vmatpush2.bf16.msra.mxu0 0
        %661 = vmatprep.mubr.bf16.mxu0 0
        %662 = vmatmul.mubr.bf16.gmra.mxu0 %v627
        %v663 = vpop.f32.mrf.mxu0
        %v664 = vadd.f32 %v599, %v663
        %v665 = vpop.f32.mrf.mxu0
        %v666 = vpop.f32.mrf.mxu0
        %v667 = vpop.f32.mrf.mxu0
        %668 = vdwg.mxu0
        %v669 = vld [vmem:[#allocation7] sm:$0xf]
        %v670 = vld [vmem:[#allocation7 + $0x4] sm:$0xf]
        %v671 = vld [vmem:[#allocation7 + $0x8] sm:$0xf]
        %v672 = vld [vmem:[#allocation7 + $0xc] sm:$0xf]
        %v673 = vld [vmem:[#allocation7 + $0x10] sm:$0xf]
        %v674 = vld [vmem:[#allocation7 + $0x14] sm:$0xf]
        %v675 = vld [vmem:[#allocation7 + $0x18] sm:$0xf]
        %v676 = vld [vmem:[#allocation7 + $0x1c] sm:$0xf]
        %v677 = vld [vmem:[#allocation7 + $0x20] sm:$0xf]
        %v678 = vld [vmem:[#allocation7 + $0x24] sm:$0xf]
        %v679 = vld [vmem:[#allocation7 + $0x28] sm:$0xf]
        %v680 = vld [vmem:[#allocation7 + $0x2c] sm:$0xf]
        %v681 = vld [vmem:[#allocation7 + $0x30] sm:$0xf]
        %v682 = vld [vmem:[#allocation7 + $0x34] sm:$0xf]
        %v683 = vld [vmem:[#allocation7 + $0x38] sm:$0xf]
        %v684 = vld [vmem:[#allocation7 + $0x3c] sm:$0xf]
        %v685 = vld [vmem:[%s4] sm:$0x1]
        %v686 = vld [vmem:[#allocation8] sm:$0xf]
        %v687 = vld [vmem:[#allocation8 + $0x4] sm:$0xf]
        %v688 = vld [vmem:[#allocation8 + $0x8] sm:$0xf]
        %v689 = vld [vmem:[#allocation8 + $0xc] sm:$0xf]
        %v690 = vld [vmem:[#allocation8 + $0x10] sm:$0xf]
        %v691 = vld [vmem:[#allocation8 + $0x14] sm:$0xf]
        %v692 = vld [vmem:[#allocation8 + $0x18] sm:$0xf]
        %v693 = vld [vmem:[#allocation8 + $0x1c] sm:$0xf]
        %v694 = vld [vmem:[#allocation8 + $0x20] sm:$0xf]
        %v695 = vld [vmem:[#allocation8 + $0x24] sm:$0xf]
        %v696 = vld [vmem:[#allocation8 + $0x28] sm:$0xf]
        %v697 = vld [vmem:[#allocation8 + $0x2c] sm:$0xf]
        %v698 = vld [vmem:[#allocation8 + $0x30] sm:$0xf]
        %v699 = vld [vmem:[#allocation8 + $0x34] sm:$0xf]
        %v700 = vld [vmem:[#allocation8 + $0x38] sm:$0xf]
        %v701 = vld [vmem:[#allocation8 + $0x3c] sm:$0xf]
        %v702 = vld [vmem:[%s6] sm:$0x1]
        %v703 = vld [vmem:[%s7] sm:$0x1]
        %v704 = vld [vmem:[%s8] sm:$0x1]
        %v705 = vpack.c.bf16 %v664, %v664
        %v707 = vlaneseq
        %v708 = vshrl.u32 %v707, 7
        %v709 = vsub.s32 0, %v708
        %v710 = vrot.slane %v685, %v709
        %v728 = vunpack.c.l.b16 %v669
        %v729 = vunpack.c.l.b16 %v670
        %v730 = vunpack.c.l.b16 %v671
        %v731 = vunpack.c.l.b16 %v672
        %v732 = vunpack.c.l.b16 %v673
        %v733 = vunpack.c.l.b16 %v674
        %v734 = vunpack.c.l.b16 %v675
        %v735 = vunpack.c.l.b16 %v676
        %v736 = vunpack.c.l.b16 %v677
        %v737 = vunpack.c.l.b16 %v678
        %v738 = vunpack.c.l.b16 %v679
        %v739 = vunpack.c.l.b16 %v680
        %v740 = vunpack.c.l.b16 %v681
        %v741 = vunpack.c.l.b16 %v682
        %v742 = vunpack.c.l.b16 %v683
        %v743 = vunpack.c.l.b16 %v684
        %v744 = vpack.c.b16 %v729, %v728
        %v745 = vpack.c.b16 %v731, %v730
        %v746 = vpack.c.b16 %v733, %v732
        %v747 = vpack.c.b16 %v735, %v734
        %v748 = vpack.c.b16 %v737, %v736
        %v749 = vpack.c.b16 %v739, %v738
        %v750 = vpack.c.b16 %v741, %v740
        %v751 = vpack.c.b16 %v743, %v742
        %760 = vmatprep.subr.bf16.mxu0 0
        %761 = vmatpush1.bf16.msra.mxu0 %v751
        %762 = vmatprep.subr.bf16.mxu0 0
        %763 = vmatpush1.bf16.msra.mxu0 %v750
        %764 = vmatprep.subr.bf16.mxu0 0
        %765 = vmatpush1.bf16.msra.mxu0 %v749
        %766 = vmatprep.subr.bf16.mxu0 0
        %767 = vmatpush1.bf16.msra.mxu0 %v748
        %768 = vmatprep.subr.bf16.mxu0 0
        %769 = vmatpush1.bf16.msra.mxu0 %v747
        %770 = vmatprep.subr.bf16.mxu0 0
        %771 = vmatpush1.bf16.msra.mxu0 %v746
        %772 = vmatprep.subr.bf16.mxu0 0
        %773 = vmatpush1.bf16.msra.mxu0 %v745
        %774 = vmatprep.subr.bf16.mxu0 0
        %775 = vmatpush1.bf16.msra.mxu0 %v744
        %776 = vmatprep.subr.bf16.mxu0 0
        %777 = vmatpush2.bf16.msra.mxu0 0
        %778 = vmatprep.subr.bf16.mxu0 0
        %779 = vmatpush2.bf16.msra.mxu0 0
        %780 = vmatprep.subr.bf16.mxu0 0
        %781 = vmatpush2.bf16.msra.mxu0 0
        %782 = vmatprep.subr.bf16.mxu0 0
        %783 = vmatpush2.bf16.msra.mxu0 0
        %784 = vmatprep.subr.bf16.mxu0 0
        %785 = vmatpush2.bf16.msra.mxu0 0
        %786 = vmatprep.subr.bf16.mxu0 0
        %787 = vmatpush2.bf16.msra.mxu0 0
        %788 = vmatprep.subr.bf16.mxu0 0
        %789 = vmatpush2.bf16.msra.mxu0 0
        %790 = vmatprep.subr.bf16.mxu0 0
        %791 = vmatpush2.bf16.msra.mxu0 0
        %792 = vmatprep.mubr.bf16.mxu0 0
        %793 = vmatmul.mubr.bf16.gmra.mxu0 %v705
        %v794 = vpop.f32.mrf.mxu0
        %v795 = vadd.f32 %v710, %v794
        %v796 = vpop.f32.mrf.mxu0
        %v797 = vpop.f32.mrf.mxu0
        %v798 = vpop.f32.mrf.mxu0
        %799 = vdwg.mxu0
        %v800 = vmax.f32 %v795, 0.0
        %v801 = vpack.c.bf16 %v800, %v800
        %v803 = vlaneseq
        %v804 = vshrl.u32 %v803, 7
        %v805 = vsub.s32 0, %v804
        %v806 = vrot.slane %v702, %v805
        %v824 = vunpack.c.l.b16 %v686
        %v825 = vunpack.c.l.b16 %v687
        %v826 = vunpack.c.l.b16 %v688
        %v827 = vunpack.c.l.b16 %v689
        %v828 = vunpack.c.l.b16 %v690
        %v829 = vunpack.c.l.b16 %v691
        %v830 = vunpack.c.l.b16 %v692
        %v831 = vunpack.c.l.b16 %v693
        %v832 = vunpack.c.l.b16 %v694
        %v833 = vunpack.c.l.b16 %v695
        %v834 = vunpack.c.l.b16 %v696
        %v835 = vunpack.c.l.b16 %v697
        %v836 = vunpack.c.l.b16 %v698
        %v837 = vunpack.c.l.b16 %v699
        %v838 = vunpack.c.l.b16 %v700
        %v839 = vunpack.c.l.b16 %v701
        %v840 = vpack.c.b16 %v825, %v824
        %v841 = vpack.c.b16 %v827, %v826
        %v842 = vpack.c.b16 %v829, %v828
        %v843 = vpack.c.b16 %v831, %v830
        %v844 = vpack.c.b16 %v833, %v832
        %v845 = vpack.c.b16 %v835, %v834
        %v846 = vpack.c.b16 %v837, %v836
        %v847 = vpack.c.b16 %v839, %v838
        %856 = vmatprep.subr.bf16.mxu0 0
        %857 = vmatpush1.bf16.msra.mxu0 %v847
        %858 = vmatprep.subr.bf16.mxu0 0
        %859 = vmatpush1.bf16.msra.mxu0 %v846
        %860 = vmatprep.subr.bf16.mxu0 0
        %861 = vmatpush1.bf16.msra.mxu0 %v845
        %862 = vmatprep.subr.bf16.mxu0 0
        %863 = vmatpush1.bf16.msra.mxu0 %v844
        %864 = vmatprep.subr.bf16.mxu0 0
        %865 = vmatpush1.bf16.msra.mxu0 %v843
        %866 = vmatprep.subr.bf16.mxu0 0
        %867 = vmatpush1.bf16.msra.mxu0 %v842
        %868 = vmatprep.subr.bf16.mxu0 0
        %869 = vmatpush1.bf16.msra.mxu0 %v841
        %870 = vmatprep.subr.bf16.mxu0 0
        %871 = vmatpush1.bf16.msra.mxu0 %v840
        %872 = vmatprep.subr.bf16.mxu0 0
        %873 = vmatpush2.bf16.msra.mxu0 0
        %874 = vmatprep.subr.bf16.mxu0 0
        %875 = vmatpush2.bf16.msra.mxu0 0
        %876 = vmatprep.subr.bf16.mxu0 0
        %877 = vmatpush2.bf16.msra.mxu0 0
        %878 = vmatprep.subr.bf16.mxu0 0
        %879 = vmatpush2.bf16.msra.mxu0 0
        %880 = vmatprep.subr.bf16.mxu0 0
        %881 = vmatpush2.bf16.msra.mxu0 0
        %882 = vmatprep.subr.bf16.mxu0 0
        %883 = vmatpush2.bf16.msra.mxu0 0
        %884 = vmatprep.subr.bf16.mxu0 0
        %885 = vmatpush2.bf16.msra.mxu0 0
        %886 = vmatprep.subr.bf16.mxu0 0
        %887 = vmatpush2.bf16.msra.mxu0 0
        %888 = vmatprep.mubr.bf16.mxu0 0
        %889 = vmatmul.mubr.bf16.gmra.mxu0 %v801
        %v890 = vpop.f32.mrf.mxu0
        %v891 = vadd.f32 %v806, %v890
        %v892 = vpop.f32.mrf.mxu0
        %v893 = vpop.f32.mrf.mxu0
        %v894 = vpop.f32.mrf.mxu0
        %895 = vdwg.mxu0
        %v896 = vadd.f32 %v664, %v891
        %897 = vadd.xlane.f32.xlu0 %v896
        %v898 = vpop.xlane.xlu0 %897
        %v899 = vrcp.pop 128.0
        %v900 = vmul.f32 %v898, %v899
        %v901 = vsub.f32 %v896, %v900
        %v902 = vmul.f32 %v901, %v901
        %903 = vadd.xlane.f32.xlu0 %v902
        %v904 = vpop.xlane.xlu0 %903
        %v905 = vmul.f32 %v904, %v899
        %v906 = vadd.f32 %v905, 1e-05
        %v907 = vrsqrt.pop %v906
        %v908 = vmul.f32 %v901, %v907
        %v910 = vlaneseq
        %v911 = vshrl.u32 %v910, 7
        %v912 = vsub.s32 0, %v911
        %v913 = vrot.slane %v703, %v912
        %v915 = vmul.f32 %v908, %v913
        %v917 = vlaneseq
        %v918 = vshrl.u32 %v917, 7
        %v919 = vsub.s32 0, %v918
        %v920 = vrot.slane %v704, %v919
        %v922 = vadd.f32 %v915, %v920
        %v923 = vld [vmem:[#allocation10] sm:$0xf]
        %v924 = vld [vmem:[#allocation10 + $0x4] sm:$0xf]
        %v925 = vld [vmem:[#allocation10 + $0x8] sm:$0xf]
        %v926 = vld [vmem:[#allocation10 + $0xc] sm:$0xf]
        %v927 = vld [vmem:[#allocation10 + $0x10] sm:$0xf]
        %v928 = vld [vmem:[#allocation10 + $0x14] sm:$0xf]
        %v929 = vld [vmem:[#allocation10 + $0x18] sm:$0xf]
        %v930 = vld [vmem:[#allocation10 + $0x1c] sm:$0xf]
        %v931 = vld [vmem:[#allocation10 + $0x20] sm:$0xf]
        %v932 = vld [vmem:[#allocation10 + $0x24] sm:$0xf]
        %v933 = vld [vmem:[#allocation10 + $0x28] sm:$0xf]
        %v934 = vld [vmem:[#allocation10 + $0x2c] sm:$0xf]
        %v935 = vld [vmem:[#allocation10 + $0x30] sm:$0xf]
        %v936 = vld [vmem:[#allocation10 + $0x34] sm:$0xf]
        %v937 = vld [vmem:[#allocation10 + $0x38] sm:$0xf]
        %v938 = vld [vmem:[#allocation10 + $0x3c] sm:$0xf]
        %v939 = vld [vmem:[%s10] sm:$0x1]
        %v940 = vld [vmem:[#allocation11] sm:$0xf]
        %v941 = vld [vmem:[#allocation11 + $0x4] sm:$0xf]
        %v942 = vld [vmem:[#allocation11 + $0x8] sm:$0xf]
        %v943 = vld [vmem:[#allocation11 + $0xc] sm:$0xf]
        %v944 = vld [vmem:[#allocation11 + $0x10] sm:$0xf]
        %v945 = vld [vmem:[#allocation11 + $0x14] sm:$0xf]
        %v946 = vld [vmem:[#allocation11 + $0x18] sm:$0xf]
        %v947 = vld [vmem:[#allocation11 + $0x1c] sm:$0xf]
        %v948 = vld [vmem:[#allocation11 + $0x20] sm:$0xf]
        %v949 = vld [vmem:[#allocation11 + $0x24] sm:$0xf]
        %v950 = vld [vmem:[#allocation11 + $0x28] sm:$0xf]
        %v951 = vld [vmem:[#allocation11 + $0x2c] sm:$0xf]
        %v952 = vld [vmem:[#allocation11 + $0x30] sm:$0xf]
        %v953 = vld [vmem:[#allocation11 + $0x34] sm:$0xf]
        %v954 = vld [vmem:[#allocation11 + $0x38] sm:$0xf]
        %v955 = vld [vmem:[#allocation11 + $0x3c] sm:$0xf]
        %v956 = vld [vmem:[%s12] sm:$0x1]
        %v957 = vld [vmem:[%s13] sm:$0x1]
        %v958 = vld [vmem:[%s14] sm:$0x1]
        %v959 = vpack.c.bf16 %v922, %v922
        %v961 = vlaneseq
        %v962 = vshrl.u32 %v961, 7
        %v963 = vsub.s32 0, %v962
        %v964 = vrot.slane %v939, %v963
        %v982 = vunpack.c.l.b16 %v923
        %v983 = vunpack.c.l.b16 %v924
        %v984 = vunpack.c.l.b16 %v925
        %v985 = vunpack.c.l.b16 %v926
        %v986 = vunpack.c.l.b16 %v927
        %v987 = vunpack.c.l.b16 %v928
        %v988 = vunpack.c.l.b16 %v929
        %v989 = vunpack.c.l.b16 %v930
        %v990 = vunpack.c.l.b16 %v931
        %v991 = vunpack.c.l.b16 %v932
        %v992 = vunpack.c.l.b16 %v933
        %v993 = vunpack.c.l.b16 %v934
        %v994 = vunpack.c.l.b16 %v935
        %v995 = vunpack.c.l.b16 %v936
        %v996 = vunpack.c.l.b16 %v937
        %v997 = vunpack.c.l.b16 %v938
        %v998 = vpack.c.b16 %v983, %v982
        %v999 = vpack.c.b16 %v985, %v984
        %v1000 = vpack.c.b16 %v987, %v986
        %v1001 = vpack.c.b16 %v989, %v988
        %v1002 = vpack.c.b16 %v991, %v990
        %v1003 = vpack.c.b16 %v993, %v992
        %v1004 = vpack.c.b16 %v995, %v994
        %v1005 = vpack.c.b16 %v997, %v996
        %1014 = vmatprep.subr.bf16.mxu0 0
        %1015 = vmatpush1.bf16.msra.mxu0 %v1005
        %1016 = vmatprep.subr.bf16.mxu0 0
        %1017 = vmatpush1.bf16.msra.mxu0 %v1004
        %1018 = vmatprep.subr.bf16.mxu0 0
        %1019 = vmatpush1.bf16.msra.mxu0 %v1003
        %1020 = vmatprep.subr.bf16.mxu0 0
        %1021 = vmatpush1.bf16.msra.mxu0 %v1002
        %1022 = vmatprep.subr.bf16.mxu0 0
        %1023 = vmatpush1.bf16.msra.mxu0 %v1001
        %1024 = vmatprep.subr.bf16.mxu0 0
        %1025 = vmatpush1.bf16.msra.mxu0 %v1000
        %1026 = vmatprep.subr.bf16.mxu0 0
        %1027 = vmatpush1.bf16.msra.mxu0 %v999
        %1028 = vmatprep.subr.bf16.mxu0 0
        %1029 = vmatpush1.bf16.msra.mxu0 %v998
        %1030 = vmatprep.subr.bf16.mxu0 0
        %1031 = vmatpush2.bf16.msra.mxu0 0
        %1032 = vmatprep.subr.bf16.mxu0 0
        %1033 = vmatpush2.bf16.msra.mxu0 0
        %1034 = vmatprep.subr.bf16.mxu0 0
        %1035 = vmatpush2.bf16.msra.mxu0 0
        %1036 = vmatprep.subr.bf16.mxu0 0
        %1037 = vmatpush2.bf16.msra.mxu0 0
        %1038 = vmatprep.subr.bf16.mxu0 0
        %1039 = vmatpush2.bf16.msra.mxu0 0
        %1040 = vmatprep.subr.bf16.mxu0 0
        %1041 = vmatpush2.bf16.msra.mxu0 0
        %1042 = vmatprep.subr.bf16.mxu0 0
        %1043 = vmatpush2.bf16.msra.mxu0 0
        %1044 = vmatprep.subr.bf16.mxu0 0
        %1045 = vmatpush2.bf16.msra.mxu0 0
        %1046 = vmatprep.mubr.bf16.mxu0 0
        %1047 = vmatmul.mubr.bf16.gmra.mxu0 %v959
        %v1048 = vpop.f32.mrf.mxu0
        %v1049 = vadd.f32 %v964, %v1048
        %v1050 = vpop.f32.mrf.mxu0
        %v1051 = vpop.f32.mrf.mxu0
        %v1052 = vpop.f32.mrf.mxu0
        %1053 = vdwg.mxu0
        %v1054 = vmax.f32 %v1049, 0.0
        %v1055 = vpack.c.bf16 %v1054, %v1054
        %v1057 = vlaneseq
        %v1058 = vshrl.u32 %v1057, 7
        %v1059 = vsub.s32 0, %v1058
        %v1060 = vrot.slane %v956, %v1059
        %v1078 = vunpack.c.l.b16 %v940
        %v1079 = vunpack.c.l.b16 %v941
        %v1080 = vunpack.c.l.b16 %v942
        %v1081 = vunpack.c.l.b16 %v943
        %v1082 = vunpack.c.l.b16 %v944
        %v1083 = vunpack.c.l.b16 %v945
        %v1084 = vunpack.c.l.b16 %v946
        %v1085 = vunpack.c.l.b16 %v947
        %v1086 = vunpack.c.l.b16 %v948
        %v1087 = vunpack.c.l.b16 %v949
        %v1088 = vunpack.c.l.b16 %v950
        %v1089 = vunpack.c.l.b16 %v951
        %v1090 = vunpack.c.l.b16 %v952
        %v1091 = vunpack.c.l.b16 %v953
        %v1092 = vunpack.c.l.b16 %v954
        %v1093 = vunpack.c.l.b16 %v955
        %v1094 = vpack.c.b16 %v1079, %v1078
        %v1095 = vpack.c.b16 %v1081, %v1080
        %v1096 = vpack.c.b16 %v1083, %v1082
        %v1097 = vpack.c.b16 %v1085, %v1084
        %v1098 = vpack.c.b16 %v1087, %v1086
        %v1099 = vpack.c.b16 %v1089, %v1088
        %v1100 = vpack.c.b16 %v1091, %v1090
        %v1101 = vpack.c.b16 %v1093, %v1092
        %1110 = vmatprep.subr.bf16.mxu0 0
        %1111 = vmatpush1.bf16.msra.mxu0 %v1101
        %1112 = vmatprep.subr.bf16.mxu0 0
        %1113 = vmatpush1.bf16.msra.mxu0 %v1100
        %1114 = vmatprep.subr.bf16.mxu0 0
        %1115 = vmatpush1.bf16.msra.mxu0 %v1099
        %1116 = vmatprep.subr.bf16.mxu0 0
        %1117 = vmatpush1.bf16.msra.mxu0 %v1098
        %1118 = vmatprep.subr.bf16.mxu0 0
        %1119 = vmatpush1.bf16.msra.mxu0 %v1097
        %1120 = vmatprep.subr.bf16.mxu0 0
        %1121 = vmatpush1.bf16.msra.mxu0 %v1096
        %1122 = vmatprep.subr.bf16.mxu0 0
        %1123 = vmatpush1.bf16.msra.mxu0 %v1095
        %1124 = vmatprep.subr.bf16.mxu0 0
        %1125 = vmatpush1.bf16.msra.mxu0 %v1094
        %1126 = vmatprep.subr.bf16.mxu0 0
        %1127 = vmatpush2.bf16.msra.mxu0 0
        %1128 = vmatprep.subr.bf16.mxu0 0
        %1129 = vmatpush2.bf16.msra.mxu0 0
        %1130 = vmatprep.subr.bf16.mxu0 0
        %1131 = vmatpush2.bf16.msra.mxu0 0
        %1132 = vmatprep.subr.bf16.mxu0 0
        %1133 = vmatpush2.bf16.msra.mxu0 0
        %1134 = vmatprep.subr.bf16.mxu0 0
        %1135 = vmatpush2.bf16.msra.mxu0 0
        %1136 = vmatprep.subr.bf16.mxu0 0
        %1137 = vmatpush2.bf16.msra.mxu0 0
        %1138 = vmatprep.subr.bf16.mxu0 0
        %1139 = vmatpush2.bf16.msra.mxu0 0
        %1140 = vmatprep.subr.bf16.mxu0 0
        %1141 = vmatpush2.bf16.msra.mxu0 0
        %1142 = vmatprep.mubr.bf16.mxu0 0
        %1143 = vmatmul.mubr.bf16.gmra.mxu0 %v1055
        %v1144 = vpop.f32.mrf.mxu0
        %v1145 = vadd.f32 %v1060, %v1144
        %v1146 = vpop.f32.mrf.mxu0
        %v1147 = vpop.f32.mrf.mxu0
        %v1148 = vpop.f32.mrf.mxu0
        %1149 = vdwg.mxu0
        %v1150 = vadd.f32 %v922, %v1145
        %1151 = vadd.xlane.f32.xlu0 %v1150
        %v1152 = vpop.xlane.xlu0 %1151
        %v1153 = vmul.f32 %v1152, %v899
        %v1154 = vsub.f32 %v1150, %v1153
        %v1155 = vmul.f32 %v1154, %v1154
        %1156 = vadd.xlane.f32.xlu0 %v1155
        %v1157 = vpop.xlane.xlu0 %1156
        %v1158 = vmul.f32 %v1157, %v899
        %v1159 = vadd.f32 %v1158, 1e-05
        %v1160 = vrsqrt.pop %v1159
        %v1161 = vmul.f32 %v1154, %v1160
        %v1163 = vlaneseq
        %v1164 = vshrl.u32 %v1163, 7
        %v1165 = vsub.s32 0, %v1164
        %v1166 = vrot.slane %v957, %v1165
        %v1168 = vmul.f32 %v1161, %v1166
        %v1170 = vlaneseq
        %v1171 = vshrl.u32 %v1170, 7
        %v1172 = vsub.s32 0, %v1171
        %v1173 = vrot.slane %v958, %v1172
        %v1175 = vadd.f32 %v1168, %v1173
        %1176 = vst [vmem:[%s582] sm:$0xff] %v1175
        %s1177 = sand.u32 %s363, 1
        %s1178 = scalar_lea.sflag [#allocation4], %s1177
        %s1179 = sand.u32 %s363, 1
        %s1180 = smul.addr %s1179, 8
        %s1181 = scalar_lea.vmem [#allocation13], %s1180
        // Predicated region
        $region105: #{tpu_custom_call.1} parent=79 // pred_check
          %p1182 = pneg %p373
        $region106: #{tpu_custom_call.1} parent=79 // pred_check_branch
          %1184 = sbr.rel (%p1182) target = $region108
        $region107: #{tpu_custom_call.1} parent=79 // pred_region
          %s1186 = ssub.s32 128, 128
          %1187 = vsyncadd %s1178, %s1186
          %s1188 = smul.addr %s35, 128
          %s1189 = scalar_lea.hbm %s15, %s1188
          %s1191 = sshll.u32 %s1181, 4
          %s1192 = int_to_ptr.vmem [resolvable:$true] %s1191
          %1194 = dma.vmem_to_hbm [thread:$0]  %s1192, 128, %s1189, %s1178
        $region108: #{tpu_custom_call.1} parent=79 // pred_fallthru
          _
      $region80: #{tpu_custom_call.1} parent=5 // pred_fallthru
        _
      %p1195 = scmp.le.s32.totalorder 2, %s30
      // Predicated region
      $region109: #{tpu_custom_call.1} parent=5 // pred_check
        %p1196 = pneg %p1195
      $region110: #{tpu_custom_call.1} parent=5 // pred_check_branch
        %1198 = sbr.rel (%p1196) target = $region112
      $region111: #{tpu_custom_call.1} parent=5 // pred_region
        %s1199 = ssub.s32 %s30, 2
        // Predicated region
        $region113: #{tpu_custom_call.1} parent=111 // pred_check
          %p1200 = pneg %p379
        $region114: #{tpu_custom_call.1} parent=111 // pred_check_branch
          %1202 = sbr.rel (%p1200) target = $region116
        $region115: #{tpu_custom_call.1} parent=111 // pred_region
          %s1203 = sand.u32 %s364, 1
          %s1204 = scalar_lea.sflag [#allocation4], %s1203
          %s1205 = sand.u32 %s364, 1
          %s1206 = smul.addr %s1205, 8
          %s1207 = scalar_lea.vmem [#allocation13], %s1206
          %1208 = dma.done %s1204, 128
        $region116: #{tpu_custom_call.1} parent=111 // pred_fallthru
          _
      $region112: #{tpu_custom_call.1} parent=5 // pred_fallthru
        _
    $region6: #{tpu_custom_call.1} parent=1 // loop_footer
      %s34 = sadd.s32 1, %s30
    $region7: #{tpu_custom_call.1} parent=1 // loop_footer_branch
      %29 = sbr.rel target = $region3
    $region8: #{tpu_custom_call.1} parent=1 // loop_exit
      _
    %1209 = vsyncpa [#allocation3], 1
    %s1210 = scalar_lea.sflag [#allocation3], 1
    %1211 = vsyncpa %s1210, 1
    %1212 = vsyncpa [#allocation6], 1
    %1213 = vsyncpa [#allocation9], 1
    %1214 = vsyncpa [#allocation12], 1
    %1215 = vsyncpa [#allocation4], 1
    %s1216 = scalar_lea.sflag [#allocation4], 1
    %1217 = vsyncpa %s1216, 1

</llo_original>
